<compile_context>
chip_gen: v7x
topology: tpu7x:2x2x1
jax: 0.10.0
libtpu: 0.0.40
codegen_flags: <defaults>
</compile_context>

<pallas_src>
import jax
import jax.numpy as jnp
from jax.experimental import pallas as pl
from jax.experimental.pallas import tpu as pltpu

FILTERS = 5
KSIZE = 5
IMG = 28
OUT_HW = IMG - KSIZE + 1              # 24 conv output rows/cols
NPOS = OUT_HW * OUT_HW                # 576
FC1_SIZE = 50
NCLASS = 10
NCLASS_PAD = 128                      # lane-dense output slab

ROW_N = FILTERS * OUT_HW              # 120 conv outputs per output row (channel-major)
R = 2                                 # conv output rows per matmul group
NG = OUT_HW // R                      # 12 groups
GK = (KSIZE + R - 1) * IMG            # 168 input pixels feeding one group
GN = R * ROW_N                        # 240 conv outputs per group


def _cff_kernel(x_ref, wg_ref, w1_ref, w2_ref, out_ref):
    # x_ref:   (TB, 784)        raw flattened pixels
    # wg_ref:  (168, 240)       conv weights scattered into 2-row grouped matmul form
    # w1_ref:  (12, 240, 50)    fc1 weights regrouped to match the conv group layout
    # w2_ref:  (50, 128)        fc2 weights, zero-padded to 128 lanes
    # out_ref: (TB, 128)        log-probs in lanes [0, NCLASS)
    tb = out_ref.shape[0]

    # conv (12 grouped row-matmuls) + ReLU + fc1 accumulation, all with M = TB.
    acc = jnp.zeros((tb, FC1_SIZE), jnp.float32)
    for g in range(NG):                                   # statically unrolled (12)
        # Ref-sliced load: only the 168 pixel columns this group needs.
        xg = x_ref[:, g * R * IMG:g * R * IMG + GK]       # (TB, 168)
        hg = jnp.dot(xg, wg_ref[...],
                     preferred_element_type=jnp.float32)  # (TB, 240)
        hg = jnp.maximum(hg, 0.0)                         # ReLU(conv) rows 2g, 2g+1
        acc = acc + jnp.dot(hg, w1_ref[g],
                            preferred_element_type=jnp.float32)  # (TB, 50)

    h2 = jnp.maximum(acc, 0.0)                            # (TB, 50)
    y = jnp.dot(h2, w2_ref[...],
                preferred_element_type=jnp.float32)       # (TB, 128)

    # log_softmax over the 10 real classes (padded lanes masked to -1e30).
    lane = jax.lax.broadcasted_iota(jnp.int32, y.shape, 1)
    y = jnp.where(lane < NCLASS, y, jnp.float32(-1e30))
    m = jnp.max(y, axis=-1, keepdims=True)
    lse = m + jnp.log(jnp.sum(jnp.exp(y - m), axis=-1, keepdims=True))
    out_ref[...] = y - lse


def _round_up(a, b):
    return (a + b - 1) // b * b


def _conv_group_weight(conv_w):
    # Wg[(r+di)*28 + j + dj, r*120 + c*24 + j] = conv_w[c, 0, di, dj]
    # so that x_flat[n, g*56 : g*56+168] @ Wg == conv output rows (2g, 2g+1),
    # each row stored channel-major.  Scatter is collision-free: the column
    # determines (r, c, j); the row then determines (di, dj).
    w = conv_w.reshape(FILTERS, KSIZE, KSIZE).astype(jnp.float32)
    r, c, di, dj, j = jnp.meshgrid(
        jnp.arange(R), jnp.arange(FILTERS), jnp.arange(KSIZE),
        jnp.arange(KSIZE), jnp.arange(OUT_HW), indexing="ij")
    rows = ((r + di) * IMG + j + dj).ravel()
    cols = (r * ROW_N + c * OUT_HW + j).ravel()
    vals = w[c, di, dj].ravel()
    return jnp.zeros((GK, GN), jnp.float32).at[rows, cols].set(vals)


def _fc1_group_weight(fc1_w):
    # w1g[g, r*120 + c*24 + j, o] = fc1_w[o, c*576 + (g*2 + r)*24 + j]
    # so that sum_g ReLU(conv rows of group g) @ w1g[g] reproduces PyTorch's
    # channel-major .view(-1, 5*24*24) flatten feeding fc1.
    w = fc1_w.T.astype(jnp.float32).reshape(FILTERS, OUT_HW, OUT_HW, FC1_SIZE)
    w = w.reshape(FILTERS, NG, R, OUT_HW, FC1_SIZE)        # [c, g, r, j, o]
    w = jnp.transpose(w, (1, 2, 0, 3, 4))                  # [g, r, c, j, o]
    return w.reshape(NG, GN, FC1_SIZE)                     # (12, 240, 50)


def _choose_tile(n, batch_tile):
    """Batch tile: multiple of 8, <= batch_tile, minimizing padded samples."""
    n8 = _round_up(n, 8)
    if n8 <= batch_tile:
        return n8                       # single tile, only sublane padding
    best_pad, best_t = None, None
    for t in range(batch_tile, 7, -8):  # prefer larger tiles on ties
        pad = _round_up(n, t) - n
        if best_pad is None or pad < best_pad:
            best_pad, best_t = pad, t
    return best_t


def cff_forward(x, conv_w, fc1_w, fc2_w, *, batch_tile=512):
    """x: (N,1,28,28); conv_w: (5,1,5,5); fc1_w: (50,2880); fc2_w: (10,50)."""
    n = x.shape[0]
    tb = _choose_tile(n, batch_tile)
    n_pad = _round_up(n, tb)

    x_flat = x.astype(jnp.float32).reshape(n, IMG * IMG)   # free reshape, no im2col
    if n_pad != n:
        x_flat = jnp.pad(x_flat, ((0, n_pad - n), (0, 0)))

    wg = _conv_group_weight(conv_w)                        # (168, 240)
    w1g = _fc1_group_weight(fc1_w)                         # (12, 240, 50)
    w2_pad = jnp.zeros((FC1_SIZE, NCLASS_PAD), jnp.float32)
    w2_pad = w2_pad.at[:, :NCLASS].set(fc2_w.T.astype(jnp.float32))

    out = pl.pallas_call(
        _cff_kernel,
        out_shape=jax.ShapeDtypeStruct((n_pad, NCLASS_PAD), jnp.float32),
        grid_spec=pltpu.PrefetchScalarGridSpec(
            num_scalar_prefetch=0,
            grid=(n_pad // tb,),
            in_specs=[
                pl.BlockSpec((tb, IMG * IMG), lambda b: (b, 0)),
                pl.BlockSpec((GK, GN), lambda b: (0, 0)),
                pl.BlockSpec((NG, GN, FC1_SIZE), lambda b: (0, 0, 0)),
                pl.BlockSpec((FC1_SIZE, NCLASS_PAD), lambda b: (0, 0)),
            ],
            out_specs=pl.BlockSpec((tb, NCLASS_PAD), lambda b: (b, 0)),
        ),
        compiler_params=pltpu.CompilerParams(
            dimension_semantics=("parallel",),
            vmem_limit_bytes=32 * 1024 * 1024),
    )(x_flat, wg, w1g, w2_pad)
    return out[:n, :NCLASS]


def _reference_forward(x, conv_w, fc1_w, fc2_w):
    # Pure-JAX reference matching PyTorch semantics (NCHW conv, channel-major flatten).
    conv = jax.lax.conv_general_dilated(
        x.astype(jnp.float32), conv_w.astype(jnp.float32),
        window_strides=(1, 1), padding="VALID",
        dimension_numbers=("NCHW", "OIHW", "NCHW"))
    h1 = jax.nn.relu(conv)                                 # (N, 5, 24, 24)
    h1 = h1.reshape(x.shape[0], FILTERS * NPOS)            # channel-major flatten
    h2 = jax.nn.relu(h1 @ fc1_w.T)
    y = h2 @ fc2_w.T
    return jax.nn.log_softmax(y, axis=1)


if __name__ == "__main__":
    key = jax.random.PRNGKey(0)
    kx, kc, k1, k2 = jax.random.split(key, 4)

    batch = 2
    x = jax.random.normal(kx, (batch, 1, 28, 28), dtype=jnp.float32)
    conv_w = jax.random.normal(kc, (FILTERS, 1, KSIZE, KSIZE), dtype=jnp.float32) * 0.1
    fc1_w = jax.random.normal(k1, (FC1_SIZE, FILTERS * NPOS), dtype=jnp.float32) * 0.02
    fc2_w = jax.random.normal(k2, (NCLASS, FC1_SIZE), dtype=jnp.float32) * 0.1

    out = cff_forward(x, conv_w, fc1_w, fc2_w)
    out = jax.block_until_ready(out)

    ref = jax.block_until_ready(_reference_forward(x, conv_w, fc1_w, fc2_w))
    assert out.shape == (batch, NCLASS)
    assert jnp.allclose(out, ref, atol=1e-4, rtol=1e-4), "mismatch vs reference"

    print("KERNEL_OK")
</pallas_src>

<mosaic_0001>
module attributes {stable_mosaic.version = 11 : i64} {
  func.func @_cff_kernel(%arg0: i32, %arg1: memref<8x784xf32, #tpu.memory_space<vmem>>, %arg2: memref<168x240xf32, #tpu.memory_space<vmem>>, %arg3: memref<12x240x50xf32, #tpu.memory_space<vmem>>, %arg4: memref<50x128xf32, #tpu.memory_space<vmem>>, %arg5: memref<8x128xf32, #tpu.memory_space<vmem>>) attributes {dimension_semantics = [#tpu.dimension_semantics<parallel>], iteration_bounds = array<i64: 1>, scalar_prefetch = 0 : i64, scratch_operands = 0 : i64, tpu.core_type = #tpu.core_type<tc>, window_params = [{transform_indices = @transform_0, window_bounds = array<i64: 8, 784>}, {pipeline_mode = #tpu.pipeline_mode<synchronous>, transform_indices = @transform_1, window_bounds = array<i64: 168, 240>}, {pipeline_mode = #tpu.pipeline_mode<synchronous>, transform_indices = @transform_2, window_bounds = array<i64: 12, 240, 50>}, {pipeline_mode = #tpu.pipeline_mode<synchronous>, transform_indices = @transform_3, window_bounds = array<i64: 50, 128>}, {transform_indices = @transform_4, window_bounds = array<i64: 8, 128>}]} {
    %cst = arith.constant 0.000000e+00 : f32
    %0 = vector.broadcast %cst : f32 to vector<8x50xf32>
    %c0 = arith.constant 0 : index
    %c0_0 = arith.constant 0 : index
    %1 = vector.load %arg1[%c0, %c0_0] : memref<8x784xf32, #tpu.memory_space<vmem>>, vector<8x168xf32>
    %c0_1 = arith.constant 0 : index
    %c0_2 = arith.constant 0 : index
    %2 = vector.load %arg2[%c0_1, %c0_2] : memref<168x240xf32, #tpu.memory_space<vmem>>, vector<168x240xf32>
    %cst_3 = arith.constant dense<0.000000e+00> : vector<8x240xf32>
    %3 = tpu.matmul %1, %2, %cst_3 {dimension_numbers = #tpu.dot_dimension_numbers<[1], [0], [0], [1], [0, 0, 1, 1], [], []>} : vector<8x168xf32>, vector<168x240xf32>, vector<8x240xf32> -> vector<8x240xf32>
    %cst_4 = arith.constant 0.000000e+00 : f32
    %4 = vector.broadcast %cst_4 : f32 to vector<8x240xf32>
    %5 = arith.maximumf %3, %4 : vector<8x240xf32>
    %c0_5 = arith.constant 0 : index
    %c0_6 = arith.constant 0 : index
    %c0_7 = arith.constant 0 : index
    %6 = vector.load %arg3[%c0_5, %c0_6, %c0_7] : memref<12x240x50xf32, #tpu.memory_space<vmem>>, vector<1x240x50xf32>
    %7 = vector.shape_cast %6 : vector<1x240x50xf32> to vector<240x50xf32>
    %cst_8 = arith.constant dense<0.000000e+00> : vector<8x50xf32>
    %8 = tpu.matmul %5, %7, %cst_8 {dimension_numbers = #tpu.dot_dimension_numbers<[1], [0], [0], [1], [0, 0, 1, 1], [], []>} : vector<8x240xf32>, vector<240x50xf32>, vector<8x50xf32> -> vector<8x50xf32>
    %9 = arith.addf %0, %8 : vector<8x50xf32>
    %c0_9 = arith.constant 0 : index
    %c56 = arith.constant 56 : index
    %10 = vector.load %arg1[%c0_9, %c56] : memref<8x784xf32, #tpu.memory_space<vmem>>, vector<8x168xf32>
    %c0_10 = arith.constant 0 : index
    %c0_11 = arith.constant 0 : index
    %11 = vector.load %arg2[%c0_10, %c0_11] : memref<168x240xf32, #tpu.memory_space<vmem>>, vector<168x240xf32>
    %cst_12 = arith.constant dense<0.000000e+00> : vector<8x240xf32>
    %12 = tpu.matmul %10, %11, %cst_12 {dimension_numbers = #tpu.dot_dimension_numbers<[1], [0], [0], [1], [0, 0, 1, 1], [], []>} : vector<8x168xf32>, vector<168x240xf32>, vector<8x240xf32> -> vector<8x240xf32>
    %cst_13 = arith.constant 0.000000e+00 : f32
    %13 = vector.broadcast %cst_13 : f32 to vector<8x240xf32>
    %14 = arith.maximumf %12, %13 : vector<8x240xf32>
    %c1 = arith.constant 1 : index
    %c0_14 = arith.constant 0 : index
    %c0_15 = arith.constant 0 : index
    %15 = vector.load %arg3[%c1, %c0_14, %c0_15] : memref<12x240x50xf32, #tpu.memory_space<vmem>>, vector<1x240x50xf32>
    %16 = vector.shape_cast %15 : vector<1x240x50xf32> to vector<240x50xf32>
    %cst_16 = arith.constant dense<0.000000e+00> : vector<8x50xf32>
    %17 = tpu.matmul %14, %16, %cst_16 {dimension_numbers = #tpu.dot_dimension_numbers<[1], [0], [0], [1], [0, 0, 1, 1], [], []>} : vector<8x240xf32>, vector<240x50xf32>, vector<8x50xf32> -> vector<8x50xf32>
    %18 = arith.addf %9, %17 : vector<8x50xf32>
    %c0_17 = arith.constant 0 : index
    %c112 = arith.constant 112 : index
    %19 = vector.load %arg1[%c0_17, %c112] : memref<8x784xf32, #tpu.memory_space<vmem>>, vector<8x168xf32>
    %c0_18 = arith.constant 0 : index
    %c0_19 = arith.constant 0 : index
    %20 = vector.load %arg2[%c0_18, %c0_19] : memref<168x240xf32, #tpu.memory_space<vmem>>, vector<168x240xf32>
    %cst_20 = arith.constant dense<0.000000e+00> : vector<8x240xf32>
    %21 = tpu.matmul %19, %20, %cst_20 {dimension_numbers = #tpu.dot_dimension_numbers<[1], [0], [0], [1], [0, 0, 1, 1], [], []>} : vector<8x168xf32>, vector<168x240xf32>, vector<8x240xf32> -> vector<8x240xf32>
    %cst_21 = arith.constant 0.000000e+00 : f32
    %22 = vector.broadcast %cst_21 : f32 to vector<8x240xf32>
    %23 = arith.maximumf %21, %22 : vector<8x240xf32>
    %c2 = arith.constant 2 : index
    %c0_22 = arith.constant 0 : index
    %c0_23 = arith.constant 0 : index
    %24 = vector.load %arg3[%c2, %c0_22, %c0_23] : memref<12x240x50xf32, #tpu.memory_space<vmem>>, vector<1x240x50xf32>
    %25 = vector.shape_cast %24 : vector<1x240x50xf32> to vector<240x50xf32>
    %cst_24 = arith.constant dense<0.000000e+00> : vector<8x50xf32>
    %26 = tpu.matmul %23, %25, %cst_24 {dimension_numbers = #tpu.dot_dimension_numbers<[1], [0], [0], [1], [0, 0, 1, 1], [], []>} : vector<8x240xf32>, vector<240x50xf32>, vector<8x50xf32> -> vector<8x50xf32>
    %27 = arith.addf %18, %26 : vector<8x50xf32>
    %c0_25 = arith.constant 0 : index
    %c168 = arith.constant 168 : index
    %28 = vector.load %arg1[%c0_25, %c168] : memref<8x784xf32, #tpu.memory_space<vmem>>, vector<8x168xf32>
    %c0_26 = arith.constant 0 : index
    %c0_27 = arith.constant 0 : index
    %29 = vector.load %arg2[%c0_26, %c0_27] : memref<168x240xf32, #tpu.memory_space<vmem>>, vector<168x240xf32>
    %cst_28 = arith.constant dense<0.000000e+00> : vector<8x240xf32>
    %30 = tpu.matmul %28, %29, %cst_28 {dimension_numbers = #tpu.dot_dimension_numbers<[1], [0], [0], [1], [0, 0, 1, 1], [], []>} : vector<8x168xf32>, vector<168x240xf32>, vector<8x240xf32> -> vector<8x240xf32>
    %cst_29 = arith.constant 0.000000e+00 : f32
    %31 = vector.broadcast %cst_29 : f32 to vector<8x240xf32>
    %32 = arith.maximumf %30, %31 : vector<8x240xf32>
    %c3 = arith.constant 3 : index
    %c0_30 = arith.constant 0 : index
    %c0_31 = arith.constant 0 : index
    %33 = vector.load %arg3[%c3, %c0_30, %c0_31] : memref<12x240x50xf32, #tpu.memory_space<vmem>>, vector<1x240x50xf32>
    %34 = vector.shape_cast %33 : vector<1x240x50xf32> to vector<240x50xf32>
    %cst_32 = arith.constant dense<0.000000e+00> : vector<8x50xf32>
    %35 = tpu.matmul %32, %34, %cst_32 {dimension_numbers = #tpu.dot_dimension_numbers<[1], [0], [0], [1], [0, 0, 1, 1], [], []>} : vector<8x240xf32>, vector<240x50xf32>, vector<8x50xf32> -> vector<8x50xf32>
    %36 = arith.addf %27, %35 : vector<8x50xf32>
    %c0_33 = arith.constant 0 : index
    %c224 = arith.constant 224 : index
    %37 = vector.load %arg1[%c0_33, %c224] : memref<8x784xf32, #tpu.memory_space<vmem>>, vector<8x168xf32>
    %c0_34 = arith.constant 0 : index
    %c0_35 = arith.constant 0 : index
    %38 = vector.load %arg2[%c0_34, %c0_35] : memref<168x240xf32, #tpu.memory_space<vmem>>, vector<168x240xf32>
    %cst_36 = arith.constant dense<0.000000e+00> : vector<8x240xf32>
    %39 = tpu.matmul %37, %38, %cst_36 {dimension_numbers = #tpu.dot_dimension_numbers<[1], [0], [0], [1], [0, 0, 1, 1], [], []>} : vector<8x168xf32>, vector<168x240xf32>, vector<8x240xf32> -> vector<8x240xf32>
    %cst_37 = arith.constant 0.000000e+00 : f32
    %40 = vector.broadcast %cst_37 : f32 to vector<8x240xf32>
    %41 = arith.maximumf %39, %40 : vector<8x240xf32>
    %c4 = arith.constant 4 : index
    %c0_38 = arith.constant 0 : index
    %c0_39 = arith.constant 0 : index
    %42 = vector.load %arg3[%c4, %c0_38, %c0_39] : memref<12x240x50xf32, #tpu.memory_space<vmem>>, vector<1x240x50xf32>
    %43 = vector.shape_cast %42 : vector<1x240x50xf32> to vector<240x50xf32>
    %cst_40 = arith.constant dense<0.000000e+00> : vector<8x50xf32>
    %44 = tpu.matmul %41, %43, %cst_40 {dimension_numbers = #tpu.dot_dimension_numbers<[1], [0], [0], [1], [0, 0, 1, 1], [], []>} : vector<8x240xf32>, vector<240x50xf32>, vector<8x50xf32> -> vector<8x50xf32>
    %45 = arith.addf %36, %44 : vector<8x50xf32>
    %c0_41 = arith.constant 0 : index
    %c280 = arith.constant 280 : index
    %46 = vector.load %arg1[%c0_41, %c280] : memref<8x784xf32, #tpu.memory_space<vmem>>, vector<8x168xf32>
    %c0_42 = arith.constant 0 : index
    %c0_43 = arith.constant 0 : index
    %47 = vector.load %arg2[%c0_42, %c0_43] : memref<168x240xf32, #tpu.memory_space<vmem>>, vector<168x240xf32>
    %cst_44 = arith.constant dense<0.000000e+00> : vector<8x240xf32>
    %48 = tpu.matmul %46, %47, %cst_44 {dimension_numbers = #tpu.dot_dimension_numbers<[1], [0], [0], [1], [0, 0, 1, 1], [], []>} : vector<8x168xf32>, vector<168x240xf32>, vector<8x240xf32> -> vector<8x240xf32>
    %cst_45 = arith.constant 0.000000e+00 : f32
    %49 = vector.broadcast %cst_45 : f32 to vector<8x240xf32>
    %50 = arith.maximumf %48, %49 : vector<8x240xf32>
    %c5 = arith.constant 5 : index
    %c0_46 = arith.constant 0 : index
    %c0_47 = arith.constant 0 : index
    %51 = vector.load %arg3[%c5, %c0_46, %c0_47] : memref<12x240x50xf32, #tpu.memory_space<vmem>>, vector<1x240x50xf32>
    %52 = vector.shape_cast %51 : vector<1x240x50xf32> to vector<240x50xf32>
    %cst_48 = arith.constant dense<0.000000e+00> : vector<8x50xf32>
    %53 = tpu.matmul %50, %52, %cst_48 {dimension_numbers = #tpu.dot_dimension_numbers<[1], [0], [0], [1], [0, 0, 1, 1], [], []>} : vector<8x240xf32>, vector<240x50xf32>, vector<8x50xf32> -> vector<8x50xf32>
    %54 = arith.addf %45, %53 : vector<8x50xf32>
    %c0_49 = arith.constant 0 : index
    %c336 = arith.constant 336 : index
    %55 = vector.load %arg1[%c0_49, %c336] : memref<8x784xf32, #tpu.memory_space<vmem>>, vector<8x168xf32>
    %c0_50 = arith.constant 0 : index
    %c0_51 = arith.constant 0 : index
    %56 = vector.load %arg2[%c0_50, %c0_51] : memref<168x240xf32, #tpu.memory_space<vmem>>, vector<168x240xf32>
    %cst_52 = arith.constant dense<0.000000e+00> : vector<8x240xf32>
    %57 = tpu.matmul %55, %56, %cst_52 {dimension_numbers = #tpu.dot_dimension_numbers<[1], [0], [0], [1], [0, 0, 1, 1], [], []>} : vector<8x168xf32>, vector<168x240xf32>, vector<8x240xf32> -> vector<8x240xf32>
    %cst_53 = arith.constant 0.000000e+00 : f32
    %58 = vector.broadcast %cst_53 : f32 to vector<8x240xf32>
    %59 = arith.maximumf %57, %58 : vector<8x240xf32>
    %c6 = arith.constant 6 : index
    %c0_54 = arith.constant 0 : index
    %c0_55 = arith.constant 0 : index
    %60 = vector.load %arg3[%c6, %c0_54, %c0_55] : memref<12x240x50xf32, #tpu.memory_space<vmem>>, vector<1x240x50xf32>
    %61 = vector.shape_cast %60 : vector<1x240x50xf32> to vector<240x50xf32>
    %cst_56 = arith.constant dense<0.000000e+00> : vector<8x50xf32>
    %62 = tpu.matmul %59, %61, %cst_56 {dimension_numbers = #tpu.dot_dimension_numbers<[1], [0], [0], [1], [0, 0, 1, 1], [], []>} : vector<8x240xf32>, vector<240x50xf32>, vector<8x50xf32> -> vector<8x50xf32>
    %63 = arith.addf %54, %62 : vector<8x50xf32>
    %c0_57 = arith.constant 0 : index
    %c392 = arith.constant 392 : index
    %64 = vector.load %arg1[%c0_57, %c392] : memref<8x784xf32, #tpu.memory_space<vmem>>, vector<8x168xf32>
    %c0_58 = arith.constant 0 : index
    %c0_59 = arith.constant 0 : index
    %65 = vector.load %arg2[%c0_58, %c0_59] : memref<168x240xf32, #tpu.memory_space<vmem>>, vector<168x240xf32>
    %cst_60 = arith.constant dense<0.000000e+00> : vector<8x240xf32>
    %66 = tpu.matmul %64, %65, %cst_60 {dimension_numbers = #tpu.dot_dimension_numbers<[1], [0], [0], [1], [0, 0, 1, 1], [], []>} : vector<8x168xf32>, vector<168x240xf32>, vector<8x240xf32> -> vector<8x240xf32>
    %cst_61 = arith.constant 0.000000e+00 : f32
    %67 = vector.broadcast %cst_61 : f32 to vector<8x240xf32>
    %68 = arith.maximumf %66, %67 : vector<8x240xf32>
    %c7 = arith.constant 7 : index
    %c0_62 = arith.constant 0 : index
    %c0_63 = arith.constant 0 : index
    %69 = vector.load %arg3[%c7, %c0_62, %c0_63] : memref<12x240x50xf32, #tpu.memory_space<vmem>>, vector<1x240x50xf32>
    %70 = vector.shape_cast %69 : vector<1x240x50xf32> to vector<240x50xf32>
    %cst_64 = arith.constant dense<0.000000e+00> : vector<8x50xf32>
    %71 = tpu.matmul %68, %70, %cst_64 {dimension_numbers = #tpu.dot_dimension_numbers<[1], [0], [0], [1], [0, 0, 1, 1], [], []>} : vector<8x240xf32>, vector<240x50xf32>, vector<8x50xf32> -> vector<8x50xf32>
    %72 = arith.addf %63, %71 : vector<8x50xf32>
    %c0_65 = arith.constant 0 : index
    %c448 = arith.constant 448 : index
    %73 = vector.load %arg1[%c0_65, %c448] : memref<8x784xf32, #tpu.memory_space<vmem>>, vector<8x168xf32>
    %c0_66 = arith.constant 0 : index
    %c0_67 = arith.constant 0 : index
    %74 = vector.load %arg2[%c0_66, %c0_67] : memref<168x240xf32, #tpu.memory_space<vmem>>, vector<168x240xf32>
    %cst_68 = arith.constant dense<0.000000e+00> : vector<8x240xf32>
    %75 = tpu.matmul %73, %74, %cst_68 {dimension_numbers = #tpu.dot_dimension_numbers<[1], [0], [0], [1], [0, 0, 1, 1], [], []>} : vector<8x168xf32>, vector<168x240xf32>, vector<8x240xf32> -> vector<8x240xf32>
    %cst_69 = arith.constant 0.000000e+00 : f32
    %76 = vector.broadcast %cst_69 : f32 to vector<8x240xf32>
    %77 = arith.maximumf %75, %76 : vector<8x240xf32>
    %c8 = arith.constant 8 : index
    %c0_70 = arith.constant 0 : index
    %c0_71 = arith.constant 0 : index
    %78 = vector.load %arg3[%c8, %c0_70, %c0_71] : memref<12x240x50xf32, #tpu.memory_space<vmem>>, vector<1x240x50xf32>
    %79 = vector.shape_cast %78 : vector<1x240x50xf32> to vector<240x50xf32>
    %cst_72 = arith.constant dense<0.000000e+00> : vector<8x50xf32>
    %80 = tpu.matmul %77, %79, %cst_72 {dimension_numbers = #tpu.dot_dimension_numbers<[1], [0], [0], [1], [0, 0, 1, 1], [], []>} : vector<8x240xf32>, vector<240x50xf32>, vector<8x50xf32> -> vector<8x50xf32>
    %81 = arith.addf %72, %80 : vector<8x50xf32>
    %c0_73 = arith.constant 0 : index
    %c504 = arith.constant 504 : index
    %82 = vector.load %arg1[%c0_73, %c504] : memref<8x784xf32, #tpu.memory_space<vmem>>, vector<8x168xf32>
    %c0_74 = arith.constant 0 : index
    %c0_75 = arith.constant 0 : index
    %83 = vector.load %arg2[%c0_74, %c0_75] : memref<168x240xf32, #tpu.memory_space<vmem>>, vector<168x240xf32>
    %cst_76 = arith.constant dense<0.000000e+00> : vector<8x240xf32>
    %84 = tpu.matmul %82, %83, %cst_76 {dimension_numbers = #tpu.dot_dimension_numbers<[1], [0], [0], [1], [0, 0, 1, 1], [], []>} : vector<8x168xf32>, vector<168x240xf32>, vector<8x240xf32> -> vector<8x240xf32>
    %cst_77 = arith.constant 0.000000e+00 : f32
    %85 = vector.broadcast %cst_77 : f32 to vector<8x240xf32>
    %86 = arith.maximumf %84, %85 : vector<8x240xf32>
    %c9 = arith.constant 9 : index
    %c0_78 = arith.constant 0 : index
    %c0_79 = arith.constant 0 : index
    %87 = vector.load %arg3[%c9, %c0_78, %c0_79] : memref<12x240x50xf32, #tpu.memory_space<vmem>>, vector<1x240x50xf32>
    %88 = vector.shape_cast %87 : vector<1x240x50xf32> to vector<240x50xf32>
    %cst_80 = arith.constant dense<0.000000e+00> : vector<8x50xf32>
    %89 = tpu.matmul %86, %88, %cst_80 {dimension_numbers = #tpu.dot_dimension_numbers<[1], [0], [0], [1], [0, 0, 1, 1], [], []>} : vector<8x240xf32>, vector<240x50xf32>, vector<8x50xf32> -> vector<8x50xf32>
    %90 = arith.addf %81, %89 : vector<8x50xf32>
    %c0_81 = arith.constant 0 : index
    %c560 = arith.constant 560 : index
    %91 = vector.load %arg1[%c0_81, %c560] : memref<8x784xf32, #tpu.memory_space<vmem>>, vector<8x168xf32>
    %c0_82 = arith.constant 0 : index
    %c0_83 = arith.constant 0 : index
    %92 = vector.load %arg2[%c0_82, %c0_83] : memref<168x240xf32, #tpu.memory_space<vmem>>, vector<168x240xf32>
    %cst_84 = arith.constant dense<0.000000e+00> : vector<8x240xf32>
    %93 = tpu.matmul %91, %92, %cst_84 {dimension_numbers = #tpu.dot_dimension_numbers<[1], [0], [0], [1], [0, 0, 1, 1], [], []>} : vector<8x168xf32>, vector<168x240xf32>, vector<8x240xf32> -> vector<8x240xf32>
    %cst_85 = arith.constant 0.000000e+00 : f32
    %94 = vector.broadcast %cst_85 : f32 to vector<8x240xf32>
    %95 = arith.maximumf %93, %94 : vector<8x240xf32>
    %c10 = arith.constant 10 : index
    %c0_86 = arith.constant 0 : index
    %c0_87 = arith.constant 0 : index
    %96 = vector.load %arg3[%c10, %c0_86, %c0_87] : memref<12x240x50xf32, #tpu.memory_space<vmem>>, vector<1x240x50xf32>
    %97 = vector.shape_cast %96 : vector<1x240x50xf32> to vector<240x50xf32>
    %cst_88 = arith.constant dense<0.000000e+00> : vector<8x50xf32>
    %98 = tpu.matmul %95, %97, %cst_88 {dimension_numbers = #tpu.dot_dimension_numbers<[1], [0], [0], [1], [0, 0, 1, 1], [], []>} : vector<8x240xf32>, vector<240x50xf32>, vector<8x50xf32> -> vector<8x50xf32>
    %99 = arith.addf %90, %98 : vector<8x50xf32>
    %c0_89 = arith.constant 0 : index
    %c616 = arith.constant 616 : index
    %100 = vector.load %arg1[%c0_89, %c616] : memref<8x784xf32, #tpu.memory_space<vmem>>, vector<8x168xf32>
    %c0_90 = arith.constant 0 : index
    %c0_91 = arith.constant 0 : index
    %101 = vector.load %arg2[%c0_90, %c0_91] : memref<168x240xf32, #tpu.memory_space<vmem>>, vector<168x240xf32>
    %cst_92 = arith.constant dense<0.000000e+00> : vector<8x240xf32>
    %102 = tpu.matmul %100, %101, %cst_92 {dimension_numbers = #tpu.dot_dimension_numbers<[1], [0], [0], [1], [0, 0, 1, 1], [], []>} : vector<8x168xf32>, vector<168x240xf32>, vector<8x240xf32> -> vector<8x240xf32>
    %cst_93 = arith.constant 0.000000e+00 : f32
    %103 = vector.broadcast %cst_93 : f32 to vector<8x240xf32>
    %104 = arith.maximumf %102, %103 : vector<8x240xf32>
    %c11 = arith.constant 11 : index
    %c0_94 = arith.constant 0 : index
    %c0_95 = arith.constant 0 : index
    %105 = vector.load %arg3[%c11, %c0_94, %c0_95] : memref<12x240x50xf32, #tpu.memory_space<vmem>>, vector<1x240x50xf32>
    %106 = vector.shape_cast %105 : vector<1x240x50xf32> to vector<240x50xf32>
    %cst_96 = arith.constant dense<0.000000e+00> : vector<8x50xf32>
    %107 = tpu.matmul %104, %106, %cst_96 {dimension_numbers = #tpu.dot_dimension_numbers<[1], [0], [0], [1], [0, 0, 1, 1], [], []>} : vector<8x240xf32>, vector<240x50xf32>, vector<8x50xf32> -> vector<8x50xf32>
    %108 = arith.addf %99, %107 : vector<8x50xf32>
    %cst_97 = arith.constant 0.000000e+00 : f32
    %109 = vector.broadcast %cst_97 : f32 to vector<8x50xf32>
    %110 = arith.maximumf %108, %109 : vector<8x50xf32>
    %c0_98 = arith.constant 0 : index
    %c0_99 = arith.constant 0 : index
    %111 = vector.load %arg4[%c0_98, %c0_99] : memref<50x128xf32, #tpu.memory_space<vmem>>, vector<50x128xf32>
    %cst_100 = arith.constant dense<0.000000e+00> : vector<8x128xf32>
    %112 = tpu.matmul %110, %111, %cst_100 {dimension_numbers = #tpu.dot_dimension_numbers<[1], [0], [0], [1], [0, 0, 1, 1], [], []>} : vector<8x50xf32>, vector<50x128xf32>, vector<8x128xf32> -> vector<8x128xf32>
    %113 = tpu.iota {dimensions = array<i32: 1>} : vector<8x128xi32>
    %c10_i32 = arith.constant 10 : i32
    %114 = vector.broadcast %c10_i32 : i32 to vector<8x128xi32>
    %115 = arith.cmpi slt, %113, %114 : vector<8x128xi32>
    %cst_101 = arith.constant -1.000000e+30 : f32
    %116 = vector.broadcast %cst_101 : f32 to vector<8x128xf32>
    %117 = arith.select %115, %112, %116 : vector<8x128xi1>, vector<8x128xf32>
    %cst_102 = arith.constant dense<0xFF800000> : vector<8xf32>
    %118 = vector.multi_reduction <maximumf>, %117, %cst_102 [1] : vector<8x128xf32> to vector<8xf32>
    %119 = vector.shape_cast %118 : vector<8xf32> to vector<8x1xf32>
    %120 = vector.broadcast %119 : vector<8x1xf32> to vector<8x128xf32>
    %121 = arith.subf %117, %120 : vector<8x128xf32>
    %122 = math.exp %121 : vector<8x128xf32>
    %cst_103 = arith.constant dense<0.000000e+00> : vector<8xf32>
    %123 = vector.multi_reduction <add>, %122, %cst_103 [1] : vector<8x128xf32> to vector<8xf32>
    %124 = vector.shape_cast %123 : vector<8xf32> to vector<8x1xf32>
    %125 = math.log %124 : vector<8x1xf32>
    %126 = arith.addf %119, %125 : vector<8x1xf32>
    %127 = vector.broadcast %126 : vector<8x1xf32> to vector<8x128xf32>
    %128 = arith.subf %117, %127 : vector<8x128xf32>
    %c0_104 = arith.constant 0 : index
    %c0_105 = arith.constant 0 : index
    %129 = vector.load %arg5[%c0_104, %c0_105] : memref<8x128xf32, #tpu.memory_space<vmem>>, vector<8x128xf32>
    tpu.vector_store %arg5[%c0_104, %c0_105], %128 {strides = array<i32>} : memref<8x128xf32, #tpu.memory_space<vmem>>, vector<8x128xf32>,
    return
  }
  func.func @transform_0(%arg0: i32) -> (i32, i32) {
    %c0_i32 = arith.constant 0 : i32
    %c0_i32_0 = arith.constant 0 : i32
    return %arg0, %c0_i32 : i32, i32
  }
  func.func @transform_1(%arg0: i32) -> (i32, i32) {
    %c0_i32 = arith.constant 0 : i32
    %c0_i32_0 = arith.constant 0 : i32
    %c0_i32_1 = arith.constant 0 : i32
    return %c0_i32, %c0_i32_0 : i32, i32
  }
  func.func @transform_2(%arg0: i32) -> (i32, i32, i32) {
    %c0_i32 = arith.constant 0 : i32
    %c0_i32_0 = arith.constant 0 : i32
    %c0_i32_1 = arith.constant 0 : i32
    %c0_i32_2 = arith.constant 0 : i32
    return %c0_i32, %c0_i32_0, %c0_i32_1 : i32, i32, i32
  }
  func.func @transform_3(%arg0: i32) -> (i32, i32) {
    %c0_i32 = arith.constant 0 : i32
    %c0_i32_0 = arith.constant 0 : i32
    %c0_i32_1 = arith.constant 0 : i32
    return %c0_i32, %c0_i32_0 : i32, i32
  }
  func.func @transform_4(%arg0: i32) -> (i32, i32) {
    %c0_i32 = arith.constant 0 : i32
    %c0_i32_0 = arith.constant 0 : i32
    return %arg0, %c0_i32 : i32, i32
  }
}

</mosaic_0001>

<llo_original>
// kernel: tpu_custom_call.1
$region0: #{tpu_custom_call.1}
  #allocation0 [shape = 'u32[]', space=smem, size = 0x4, offset = 0x4, fixed_abs, tag = 'smem constant byte address 0x4 - core index']
  #allocation1 [shape = 'u32[144,128]{1,0:T(1,128)}', space=vmem, size = 0x12000, scoped, tag = 'internal scratch']
  %s0 = inlined_call_operand.vmem [shape: f32[8,784], index: 0, kind: input, shape index: {}]
  %s1 = inlined_call_operand.vmem [shape: f32[168,240], index: 1, kind: input, shape index: {}]
  %s2 = inlined_call_operand.vmem [shape: f32[12,240,50], index: 2, kind: input, shape index: {}]
  %s3 = inlined_call_operand.vmem [shape: f32[50,128], index: 3, kind: input, shape index: {}]
  %s4 = inlined_call_operand.hbm [shape: f32[8,128], index: 4, kind: output, shape index: {}]
  %s5 = sld [smem:[#allocation0]]
  $region26: #{tpu_custom_call.1} parent=0
    _
  %s7 = ssub.s32 1, %s5
  %s8 = scalar_select 0, %s7, %s5
  $region1: #{tpu_custom_call.1} parent=0
    #allocation2 [shape = 'u8[4096]{0}', space=vmem, size = 0x1000, scoped, tag = 'output window, operand 0, single buffered']
    #allocation3 [shape = 's32[1]{0}', space=sflag, size = 0x4, scoped, tag = 'scoped memory for tpu_custom_call.1']
    %9 = vsyncpa [#allocation3], 0
    // Predicated region
    $region2: #{tpu_custom_call.1} parent=1 // pred_check
      _
    $region3: #{tpu_custom_call.1} parent=1 // pred_check_branch
      %11 = sbr.rel (0) target = $region5
    $region4: #{tpu_custom_call.1} parent=1 // pred_region
      _
    $region5: #{tpu_custom_call.1} parent=1 // pred_fallthru
      _
    // Predicated region
    $region6: #{tpu_custom_call.1} parent=1 // pred_check
      _
    $region7: #{tpu_custom_call.1} parent=1 // pred_check_branch
      %13 = sbr.rel (0) target = $region9
    $region8: #{tpu_custom_call.1} parent=1 // pred_region
      _
    $region9: #{tpu_custom_call.1} parent=1 // pred_fallthru
      _
    // Predicated region
    $region10: #{tpu_custom_call.1} parent=1 // pred_check
      _
    $region11: #{tpu_custom_call.1} parent=1 // pred_check_branch
      %15 = sbr.rel (0) target = $region13
    $region12: #{tpu_custom_call.1} parent=1 // pred_region
      _
    $region13: #{tpu_custom_call.1} parent=1 // pred_fallthru
      _
    // Predicated region
    $region14: #{tpu_custom_call.1} parent=1 // pred_check
      _
    $region15: #{tpu_custom_call.1} parent=1 // pred_check_branch
      %17 = sbr.rel (0) target = $region17
    $region16: #{tpu_custom_call.1} parent=1 // pred_region
      _
    $region17: #{tpu_custom_call.1} parent=1 // pred_fallthru
      _
    %v18 = vld [vmem:[%s0] sm:$0xff]
    %v19 = vld [vmem:[%s0 + $0x8] sm:$0xff]
    %v20 = vld [vmem:[%s1] sm:$0xff]
    %v21 = vld [vmem:[%s1 + $0x8] sm:$0xff]
    %v22 = vld [vmem:[%s1 + $0x10] sm:$0xff]
    %v23 = vld [vmem:[%s1 + $0x18] sm:$0xff]
    %v24 = vld [vmem:[%s1 + $0x20] sm:$0xff]
    %v25 = vld [vmem:[%s1 + $0x28] sm:$0xff]
    %v26 = vld [vmem:[%s1 + $0x30] sm:$0xff]
    %v27 = vld [vmem:[%s1 + $0x38] sm:$0xff]
    %v28 = vld [vmem:[%s1 + $0x40] sm:$0xff]
    %v29 = vld [vmem:[%s1 + $0x48] sm:$0xff]
    %v30 = vld [vmem:[%s1 + $0x50] sm:$0xff]
    %v31 = vld [vmem:[%s1 + $0x58] sm:$0xff]
    %v32 = vld [vmem:[%s1 + $0x60] sm:$0xff]
    %v33 = vld [vmem:[%s1 + $0x68] sm:$0xff]
    %v34 = vld [vmem:[%s1 + $0x70] sm:$0xff]
    %v35 = vld [vmem:[%s1 + $0x78] sm:$0xff]
    %v36 = vld [vmem:[%s1 + $0x80] sm:$0xff]
    %v37 = vld [vmem:[%s1 + $0x88] sm:$0xff]
    %v38 = vld [vmem:[%s1 + $0x90] sm:$0xff]
    %v39 = vld [vmem:[%s1 + $0x98] sm:$0xff]
    %v40 = vld [vmem:[%s1 + $0xa0] sm:$0xff]
    %v41 = vld [vmem:[%s1 + $0xa8] sm:$0xff]
    %v42 = vld [vmem:[%s1 + $0xb0] sm:$0xff]
    %v43 = vld [vmem:[%s1 + $0xb8] sm:$0xff]
    %v44 = vld [vmem:[%s1 + $0xc0] sm:$0xff]
    %v45 = vld [vmem:[%s1 + $0xc8] sm:$0xff]
    %v46 = vld [vmem:[%s1 + $0xd0] sm:$0xff]
    %v47 = vld [vmem:[%s1 + $0xd8] sm:$0xff]
    %v48 = vld [vmem:[%s1 + $0xe0] sm:$0xff]
    %v49 = vld [vmem:[%s1 + $0xe8] sm:$0xff]
    %v50 = vld [vmem:[%s1 + $0xf0] sm:$0xff]
    %v51 = vld [vmem:[%s1 + $0xf8] sm:$0xff]
    %v52 = vld [vmem:[%s1 + $0x100] sm:$0xff]
    %v53 = vld [vmem:[%s1 + $0x108] sm:$0xff]
    %v54 = vld [vmem:[%s1 + $0x110] sm:$0xff]
    %v55 = vld [vmem:[%s1 + $0x118] sm:$0xff]
    %v56 = vld [vmem:[%s1 + $0x120] sm:$0xff]
    %v57 = vld [vmem:[%s1 + $0x128] sm:$0xff]
    %v58 = vld [vmem:[%s1 + $0x130] sm:$0xff]
    %v59 = vld [vmem:[%s1 + $0x138] sm:$0xff]
    %v60 = vld [vmem:[%s1 + $0x140] sm:$0xff]
    %v61 = vld [vmem:[%s1 + $0x148] sm:$0xff]
    %vm62 = vcmask 326656
    %v64 = vsel %vm62, %v19, 0
    %66 = vmatprep.subr.mxu0 %v21
    %67 = vmatpush1.msra.mxu0 %v20
    %68 = vmatprep.subr.mxu0 %v23
    %69 = vmatpush1.msra.mxu0 %v22
    %70 = vmatprep.subr.mxu0 %v25
    %71 = vmatpush1.msra.mxu0 %v24
    %72 = vmatprep.subr.mxu0 %v27
    %73 = vmatpush1.msra.mxu0 %v26
    %74 = vmatprep.subr.mxu0 %v29
    %75 = vmatpush1.msra.mxu0 %v28
    %76 = vmatprep.subr.mxu0 %v31
    %77 = vmatpush1.msra.mxu0 %v30
    %78 = vmatprep.subr.mxu0 %v33
    %79 = vmatpush1.msra.mxu0 %v32
    %80 = vmatprep.subr.mxu0 %v35
    %81 = vmatpush1.msra.mxu0 %v34
    %82 = vmatprep.subr.mxu0 %v37
    %83 = vmatpush1.msra.mxu0 %v36
    %84 = vmatprep.subr.mxu0 %v39
    %85 = vmatpush1.msra.mxu0 %v38
    %86 = vmatprep.subr.mxu0 %v41
    %87 = vmatpush1.msra.mxu0 %v40
    %88 = vmatprep.subr.mxu0 %v43
    %89 = vmatpush1.msra.mxu0 %v42
    %90 = vmatprep.subr.mxu0 %v45
    %91 = vmatpush1.msra.mxu0 %v44
    %92 = vmatprep.subr.mxu0 %v47
    %93 = vmatpush1.msra.mxu0 %v46
    %94 = vmatprep.subr.mxu0 %v49
    %95 = vmatpush1.msra.mxu0 %v48
    %96 = vmatprep.subr.mxu0 %v51
    %97 = vmatpush1.msra.mxu0 %v50
    %98 = vmatprep.subr.mxu0 %v53
    %99 = vmatpush1.msra.mxu0 %v52
    %100 = vmatprep.subr.mxu0 %v55
    %101 = vmatpush1.msra.mxu0 %v54
    %102 = vmatprep.subr.mxu0 %v57
    %103 = vmatpush1.msra.mxu0 %v56
    %104 = vmatprep.subr.mxu0 %v59
    %105 = vmatpush1.msra.mxu0 %v58
    %106 = vmatprep.subr.mxu0 %v61
    %107 = vmatpush1.msra.mxu0 %v60
    %108 = vmatprep.subr.mxu0 0.0
    %109 = vmatpush1.msra.mxu0 0.0
    %110 = vmatprep.subr.mxu0 0.0
    %111 = vmatpush1.msra.mxu0 0.0
    %112 = vmatprep.subr.mxu0 0.0
    %113 = vmatpush1.msra.mxu0 0.0
    %114 = vmatprep.subr.mxu0 0.0
    %115 = vmatpush1.msra.mxu0 0.0
    %116 = vmatprep.subr.mxu0 0.0
    %117 = vmatpush1.msra.mxu0 0.0
    %118 = vmatprep.subr.mxu0 0.0
    %119 = vmatpush1.msra.mxu0 0.0
    %120 = vmatprep.subr.mxu0 0.0
    %121 = vmatpush1.msra.mxu0 0.0
    %122 = vmatprep.subr.mxu0 0.0
    %123 = vmatpush1.msra.mxu0 0.0
    %124 = vmatprep.subr.mxu0 0.0
    %125 = vmatpush1.msra.mxu0 0.0
    %126 = vmatprep.subr.mxu0 0.0
    %127 = vmatpush1.msra.mxu0 0.0
    %128 = vmatprep.subr.mxu0 0.0
    %129 = vmatpush1.msra.mxu0 0.0
    %130 = vmatprep.mubr.f32.mxu0 %v64
    %131 = vmatmul.mubr.f32.gmra.mrb[0].mxu0 %v18
    %v132 = vpop.f32.mrb[0].mxu0
    %v133 = vadd.f32 0.0, %v132
    %v134 = vpop.f32.mrb[0].mxu0
    %v135 = vadd.f32 0.0, %v134
    %136 = vdwg.mxu0
    %v137 = vmax.f32 %v133, 0.0
    %v138 = vmax.f32 %v135, 0.0
    %v139 = vld [vmem:[%s2] sm:$0xff]
    %v140 = vld [vmem:[%s2 + $0x8] sm:$0xff]
    %v141 = vld [vmem:[%s2 + $0x10] sm:$0xff]
    %v142 = vld [vmem:[%s2 + $0x18] sm:$0xff]
    %v143 = vld [vmem:[%s2 + $0x20] sm:$0xff]
    %v144 = vld [vmem:[%s2 + $0x28] sm:$0xff]
    %v145 = vld [vmem:[%s2 + $0x30] sm:$0xff]
    %v146 = vld [vmem:[%s2 + $0x38] sm:$0xff]
    %v147 = vld [vmem:[%s2 + $0x40] sm:$0xff]
    %v148 = vld [vmem:[%s2 + $0x48] sm:$0xff]
    %v149 = vld [vmem:[%s2 + $0x50] sm:$0xff]
    %v150 = vld [vmem:[%s2 + $0x58] sm:$0xff]
    %v151 = vld [vmem:[%s2 + $0x60] sm:$0xff]
    %v152 = vld [vmem:[%s2 + $0x68] sm:$0xff]
    %v153 = vld [vmem:[%s2 + $0x70] sm:$0xff]
    %v154 = vld [vmem:[%s2 + $0x78] sm:$0xff]
    %v155 = vld [vmem:[%s2 + $0x80] sm:$0xff]
    %v156 = vld [vmem:[%s2 + $0x88] sm:$0xff]
    %v157 = vld [vmem:[%s2 + $0x90] sm:$0xff]
    %v158 = vld [vmem:[%s2 + $0x98] sm:$0xff]
    %v159 = vld [vmem:[%s2 + $0xa0] sm:$0xff]
    %v160 = vld [vmem:[%s2 + $0xa8] sm:$0xff]
    %v161 = vld [vmem:[%s2 + $0xb0] sm:$0xff]
    %v162 = vld [vmem:[%s2 + $0xb8] sm:$0xff]
    %v163 = vld [vmem:[%s2 + $0xc0] sm:$0xff]
    %v164 = vld [vmem:[%s2 + $0xc8] sm:$0xff]
    %v165 = vld [vmem:[%s2 + $0xd0] sm:$0xff]
    %v166 = vld [vmem:[%s2 + $0xd8] sm:$0xff]
    %v167 = vld [vmem:[%s2 + $0xe0] sm:$0xff]
    %v168 = vld [vmem:[%s2 + $0xe8] sm:$0xff]
    %170 = vrot.lane.b32.xlu0 %v18, 72
    %v171 = vpop.permute.xlu0 %170
    %172 = vrot.lane.b32.xlu0 %v19, 72
    %v173 = vpop.permute.xlu0 %172
    %vm174 = vcmask 588800
    %v175 = vsel %vm174, %v171, %v173
    %v177 = vsel %vm62, %v173, 0
    %179 = vmatprep.subr.mxu0 %v21
    %180 = vmatpush1.msra.mxu0 %v20
    %181 = vmatprep.subr.mxu0 %v23
    %182 = vmatpush1.msra.mxu0 %v22
    %183 = vmatprep.subr.mxu0 %v25
    %184 = vmatpush1.msra.mxu0 %v24
    %185 = vmatprep.subr.mxu0 %v27
    %186 = vmatpush1.msra.mxu0 %v26
    %187 = vmatprep.subr.mxu0 %v29
    %188 = vmatpush1.msra.mxu0 %v28
    %189 = vmatprep.subr.mxu0 %v31
    %190 = vmatpush1.msra.mxu0 %v30
    %191 = vmatprep.subr.mxu0 %v33
    %192 = vmatpush1.msra.mxu0 %v32
    %193 = vmatprep.subr.mxu0 %v35
    %194 = vmatpush1.msra.mxu0 %v34
    %195 = vmatprep.subr.mxu0 %v37
    %196 = vmatpush1.msra.mxu0 %v36
    %197 = vmatprep.subr.mxu0 %v39
    %198 = vmatpush1.msra.mxu0 %v38
    %199 = vmatprep.subr.mxu0 %v41
    %200 = vmatpush1.msra.mxu0 %v40
    %201 = vmatprep.subr.mxu0 %v43
    %202 = vmatpush1.msra.mxu0 %v42
    %203 = vmatprep.subr.mxu0 %v45
    %204 = vmatpush1.msra.mxu0 %v44
    %205 = vmatprep.subr.mxu0 %v47
    %206 = vmatpush1.msra.mxu0 %v46
    %207 = vmatprep.subr.mxu0 %v49
    %208 = vmatpush1.msra.mxu0 %v48
    %209 = vmatprep.subr.mxu0 %v51
    %210 = vmatpush1.msra.mxu0 %v50
    %211 = vmatprep.subr.mxu0 %v53
    %212 = vmatpush1.msra.mxu0 %v52
    %213 = vmatprep.subr.mxu0 %v55
    %214 = vmatpush1.msra.mxu0 %v54
    %215 = vmatprep.subr.mxu0 %v57
    %216 = vmatpush1.msra.mxu0 %v56
    %217 = vmatprep.subr.mxu0 %v59
    %218 = vmatpush1.msra.mxu0 %v58
    %219 = vmatprep.subr.mxu0 %v61
    %220 = vmatpush1.msra.mxu0 %v60
    %221 = vmatprep.subr.mxu0 0.0
    %222 = vmatpush1.msra.mxu0 0.0
    %223 = vmatprep.subr.mxu0 0.0
    %224 = vmatpush1.msra.mxu0 0.0
    %225 = vmatprep.subr.mxu0 0.0
    %226 = vmatpush1.msra.mxu0 0.0
    %227 = vmatprep.subr.mxu0 0.0
    %228 = vmatpush1.msra.mxu0 0.0
    %229 = vmatprep.subr.mxu0 0.0
    %230 = vmatpush1.msra.mxu0 0.0
    %231 = vmatprep.subr.mxu0 0.0
    %232 = vmatpush1.msra.mxu0 0.0
    %233 = vmatprep.subr.mxu0 0.0
    %234 = vmatpush1.msra.mxu0 0.0
    %235 = vmatprep.subr.mxu0 0.0
    %236 = vmatpush1.msra.mxu0 0.0
    %237 = vmatprep.subr.mxu0 0.0
    %238 = vmatpush1.msra.mxu0 0.0
    %239 = vmatprep.subr.mxu0 0.0
    %240 = vmatpush1.msra.mxu0 0.0
    %241 = vmatprep.subr.mxu0 0.0
    %242 = vmatpush1.msra.mxu0 0.0
    %243 = vmatprep.mubr.f32.mxu0 %v177
    %244 = vmatmul.mubr.f32.gmra.mrb[0].mxu0 %v175
    %v245 = vpop.f32.mrb[0].mxu0
    %v246 = vadd.f32 0.0, %v245
    %v247 = vpop.f32.mrb[0].mxu0
    %v248 = vadd.f32 0.0, %v247
    %249 = vdwg.mxu0
    %v250 = vmax.f32 %v246, 0.0
    %v251 = vmax.f32 %v248, 0.0
    %s252 = scalar_lea.vmem %s2, 240
    %v253 = vld [vmem:[%s252] sm:$0xff]
    %v254 = vld [vmem:[%s252 + $0x8] sm:$0xff]
    %v255 = vld [vmem:[%s252 + $0x10] sm:$0xff]
    %v256 = vld [vmem:[%s252 + $0x18] sm:$0xff]
    %v257 = vld [vmem:[%s252 + $0x20] sm:$0xff]
    %v258 = vld [vmem:[%s252 + $0x28] sm:$0xff]
    %v259 = vld [vmem:[%s252 + $0x30] sm:$0xff]
    %v260 = vld [vmem:[%s252 + $0x38] sm:$0xff]
    %v261 = vld [vmem:[%s252 + $0x40] sm:$0xff]
    %v262 = vld [vmem:[%s252 + $0x48] sm:$0xff]
    %v263 = vld [vmem:[%s252 + $0x50] sm:$0xff]
    %v264 = vld [vmem:[%s252 + $0x58] sm:$0xff]
    %v265 = vld [vmem:[%s252 + $0x60] sm:$0xff]
    %v266 = vld [vmem:[%s252 + $0x68] sm:$0xff]
    %v267 = vld [vmem:[%s252 + $0x70] sm:$0xff]
    %v268 = vld [vmem:[%s252 + $0x78] sm:$0xff]
    %v269 = vld [vmem:[%s252 + $0x80] sm:$0xff]
    %v270 = vld [vmem:[%s252 + $0x88] sm:$0xff]
    %v271 = vld [vmem:[%s252 + $0x90] sm:$0xff]
    %v272 = vld [vmem:[%s252 + $0x98] sm:$0xff]
    %v273 = vld [vmem:[%s252 + $0xa0] sm:$0xff]
    %v274 = vld [vmem:[%s252 + $0xa8] sm:$0xff]
    %v275 = vld [vmem:[%s252 + $0xb0] sm:$0xff]
    %v276 = vld [vmem:[%s252 + $0xb8] sm:$0xff]
    %v277 = vld [vmem:[%s252 + $0xc0] sm:$0xff]
    %v278 = vld [vmem:[%s252 + $0xc8] sm:$0xff]
    %v279 = vld [vmem:[%s252 + $0xd0] sm:$0xff]
    %v280 = vld [vmem:[%s252 + $0xd8] sm:$0xff]
    %v281 = vld [vmem:[%s252 + $0xe0] sm:$0xff]
    %v282 = vld [vmem:[%s252 + $0xe8] sm:$0xff]
    %vm283 = vcmask 916480
    %v285 = vsel %vm283, %v251, 0
    %287 = vmatprep.subr.mxu0 0.0
    %288 = vmatpush1.msra.mxu0 %v253
    %289 = vmatprep.subr.mxu0 0.0
    %290 = vmatpush1.msra.mxu0 %v254
    %291 = vmatprep.subr.mxu0 0.0
    %292 = vmatpush1.msra.mxu0 %v255
    %293 = vmatprep.subr.mxu0 0.0
    %294 = vmatpush1.msra.mxu0 %v256
    %295 = vmatprep.subr.mxu0 0.0
    %296 = vmatpush1.msra.mxu0 %v257
    %297 = vmatprep.subr.mxu0 0.0
    %298 = vmatpush1.msra.mxu0 %v258
    %299 = vmatprep.subr.mxu0 0.0
    %300 = vmatpush1.msra.mxu0 %v259
    %301 = vmatprep.subr.mxu0 0.0
    %302 = vmatpush1.msra.mxu0 %v260
    %303 = vmatprep.subr.mxu0 0.0
    %304 = vmatpush1.msra.mxu0 %v261
    %305 = vmatprep.subr.mxu0 0.0
    %306 = vmatpush1.msra.mxu0 %v262
    %307 = vmatprep.subr.mxu0 0.0
    %308 = vmatpush1.msra.mxu0 %v263
    %309 = vmatprep.subr.mxu0 0.0
    %310 = vmatpush1.msra.mxu0 %v264
    %311 = vmatprep.subr.mxu0 0.0
    %312 = vmatpush1.msra.mxu0 %v265
    %313 = vmatprep.subr.mxu0 0.0
    %314 = vmatpush1.msra.mxu0 %v266
    %315 = vmatprep.subr.mxu0 0.0
    %316 = vmatpush1.msra.mxu0 %v267
    %317 = vmatprep.subr.mxu0 0.0
    %318 = vmatpush1.msra.mxu0 %v268
    %319 = vmatprep.subr.mxu0 0.0
    %320 = vmatpush1.msra.mxu0 %v269
    %321 = vmatprep.subr.mxu0 0.0
    %322 = vmatpush1.msra.mxu0 %v270
    %323 = vmatprep.subr.mxu0 0.0
    %324 = vmatpush1.msra.mxu0 %v271
    %325 = vmatprep.subr.mxu0 0.0
    %326 = vmatpush1.msra.mxu0 %v272
    %327 = vmatprep.subr.mxu0 0.0
    %328 = vmatpush1.msra.mxu0 %v273
    %329 = vmatprep.subr.mxu0 0.0
    %330 = vmatpush1.msra.mxu0 %v274
    %331 = vmatprep.subr.mxu0 0.0
    %332 = vmatpush1.msra.mxu0 %v275
    %333 = vmatprep.subr.mxu0 0.0
    %334 = vmatpush1.msra.mxu0 %v276
    %335 = vmatprep.subr.mxu0 0.0
    %336 = vmatpush1.msra.mxu0 %v277
    %337 = vmatprep.subr.mxu0 0.0
    %338 = vmatpush1.msra.mxu0 %v278
    %339 = vmatprep.subr.mxu0 0.0
    %340 = vmatpush1.msra.mxu0 %v279
    %341 = vmatprep.subr.mxu0 0.0
    %342 = vmatpush1.msra.mxu0 %v280
    %343 = vmatprep.subr.mxu0 0.0
    %344 = vmatpush1.msra.mxu0 %v281
    %345 = vmatprep.subr.mxu0 0.0
    %346 = vmatpush1.msra.mxu0 %v282
    %347 = vmatprep.subr.mxu0 0.0
    %348 = vmatpush1.msra.mxu0 0.0
    %349 = vmatprep.subr.mxu0 0.0
    %350 = vmatpush1.msra.mxu0 0.0
    %351 = vmatprep.mubr.f32.mxu0 %v285
    %352 = vmatmul.mubr.f32.gmra.mrb[0].mxu0 %v250
    %v353 = vpop.f32.mrb[0].mxu0
    %v354 = vadd.f32 0.0, %v353
    %v355 = vpop.f32.mrb[0].mxu0
    %356 = vdwg.mxu0
    %v358 = vsel %vm283, %v138, 0
    %360 = vmatprep.subr.mxu0 0.0
    %361 = vmatpush1.msra.mxu0 %v139
    %362 = vmatprep.subr.mxu0 0.0
    %363 = vmatpush1.msra.mxu0 %v140
    %364 = vmatprep.subr.mxu0 0.0
    %365 = vmatpush1.msra.mxu0 %v141
    %366 = vmatprep.subr.mxu0 0.0
    %367 = vmatpush1.msra.mxu0 %v142
    %368 = vmatprep.subr.mxu0 0.0
    %369 = vmatpush1.msra.mxu0 %v143
    %370 = vmatprep.subr.mxu0 0.0
    %371 = vmatpush1.msra.mxu0 %v144
    %372 = vmatprep.subr.mxu0 0.0
    %373 = vmatpush1.msra.mxu0 %v145
    %374 = vmatprep.subr.mxu0 0.0
    %375 = vmatpush1.msra.mxu0 %v146
    %376 = vmatprep.subr.mxu0 0.0
    %377 = vmatpush1.msra.mxu0 %v147
    %378 = vmatprep.subr.mxu0 0.0
    %379 = vmatpush1.msra.mxu0 %v148
    %380 = vmatprep.subr.mxu0 0.0
    %381 = vmatpush1.msra.mxu0 %v149
    %382 = vmatprep.subr.mxu0 0.0
    %383 = vmatpush1.msra.mxu0 %v150
    %384 = vmatprep.subr.mxu0 0.0
    %385 = vmatpush1.msra.mxu0 %v151
    %386 = vmatprep.subr.mxu0 0.0
    %387 = vmatpush1.msra.mxu0 %v152
    %388 = vmatprep.subr.mxu0 0.0
    %389 = vmatpush1.msra.mxu0 %v153
    %390 = vmatprep.subr.mxu0 0.0
    %391 = vmatpush1.msra.mxu0 %v154
    %392 = vmatprep.subr.mxu0 0.0
    %393 = vmatpush1.msra.mxu0 %v155
    %394 = vmatprep.subr.mxu0 0.0
    %395 = vmatpush1.msra.mxu0 %v156
    %396 = vmatprep.subr.mxu0 0.0
    %397 = vmatpush1.msra.mxu0 %v157
    %398 = vmatprep.subr.mxu0 0.0
    %399 = vmatpush1.msra.mxu0 %v158
    %400 = vmatprep.subr.mxu0 0.0
    %401 = vmatpush1.msra.mxu0 %v159
    %402 = vmatprep.subr.mxu0 0.0
    %403 = vmatpush1.msra.mxu0 %v160
    %404 = vmatprep.subr.mxu0 0.0
    %405 = vmatpush1.msra.mxu0 %v161
    %406 = vmatprep.subr.mxu0 0.0
    %407 = vmatpush1.msra.mxu0 %v162
    %408 = vmatprep.subr.mxu0 0.0
    %409 = vmatpush1.msra.mxu0 %v163
    %410 = vmatprep.subr.mxu0 0.0
    %411 = vmatpush1.msra.mxu0 %v164
    %412 = vmatprep.subr.mxu0 0.0
    %413 = vmatpush1.msra.mxu0 %v165
    %414 = vmatprep.subr.mxu0 0.0
    %415 = vmatpush1.msra.mxu0 %v166
    %416 = vmatprep.subr.mxu0 0.0
    %417 = vmatpush1.msra.mxu0 %v167
    %418 = vmatprep.subr.mxu0 0.0
    %419 = vmatpush1.msra.mxu0 %v168
    %420 = vmatprep.subr.mxu0 0.0
    %421 = vmatpush1.msra.mxu0 0.0
    %422 = vmatprep.subr.mxu0 0.0
    %423 = vmatpush1.msra.mxu0 0.0
    %424 = vmatprep.mubr.f32.mxu0 %v358
    %425 = vmatmul.mubr.f32.gmra.mrb[0].mxu0 %v137
    %v426 = vpop.f32.mrb[0].mxu0
    %v427 = vadd.f32 %v354, %v426
    %v428 = vpop.f32.mrb[0].mxu0
    %429 = vdwg.mxu0
    %v430 = vld [vmem:[%s0] sm:$0xff]
    %v431 = vld [vmem:[%s0 + $0x8] sm:$0xff]
    %v432 = vld [vmem:[%s0 + $0x10] sm:$0xff]
    %436 = vrot.lane.b32.xlu0 %v430, 16
    %v437 = vpop.permute.xlu0 %436
    %438 = vrot.lane.b32.xlu0 %v431, 16
    %v439 = vpop.permute.xlu0 %438
    %440 = vrot.lane.b32.xlu0 %v432, 16
    %v441 = vpop.permute.xlu0 %440
    %vm442 = vcmask 130048
    %v443 = vsel %vm442, %v437, %v439
    %v444 = vsel %vm442, %v439, %v441
    %v446 = vsel %vm62, %v444, 0
    %448 = vmatprep.subr.mxu0 %v21
    %449 = vmatpush1.msra.mxu0 %v20
    %450 = vmatprep.subr.mxu0 %v23
    %451 = vmatpush1.msra.mxu0 %v22
    %452 = vmatprep.subr.mxu0 %v25
    %453 = vmatpush1.msra.mxu0 %v24
    %454 = vmatprep.subr.mxu0 %v27
    %455 = vmatpush1.msra.mxu0 %v26
    %456 = vmatprep.subr.mxu0 %v29
    %457 = vmatpush1.msra.mxu0 %v28
    %458 = vmatprep.subr.mxu0 %v31
    %459 = vmatpush1.msra.mxu0 %v30
    %460 = vmatprep.subr.mxu0 %v33
    %461 = vmatpush1.msra.mxu0 %v32
    %462 = vmatprep.subr.mxu0 %v35
    %463 = vmatpush1.msra.mxu0 %v34
    %464 = vmatprep.subr.mxu0 %v37
    %465 = vmatpush1.msra.mxu0 %v36
    %466 = vmatprep.subr.mxu0 %v39
    %467 = vmatpush1.msra.mxu0 %v38
    %468 = vmatprep.subr.mxu0 %v41
    %469 = vmatpush1.msra.mxu0 %v40
    %470 = vmatprep.subr.mxu0 %v43
    %471 = vmatpush1.msra.mxu0 %v42
    %472 = vmatprep.subr.mxu0 %v45
    %473 = vmatpush1.msra.mxu0 %v44
    %474 = vmatprep.subr.mxu0 %v47
    %475 = vmatpush1.msra.mxu0 %v46
    %476 = vmatprep.subr.mxu0 %v49
    %477 = vmatpush1.msra.mxu0 %v48
    %478 = vmatprep.subr.mxu0 %v51
    %479 = vmatpush1.msra.mxu0 %v50
    %480 = vmatprep.subr.mxu0 %v53
    %481 = vmatpush1.msra.mxu0 %v52
    %482 = vmatprep.subr.mxu0 %v55
    %483 = vmatpush1.msra.mxu0 %v54
    %484 = vmatprep.subr.mxu0 %v57
    %485 = vmatpush1.msra.mxu0 %v56
    %486 = vmatprep.subr.mxu0 %v59
    %487 = vmatpush1.msra.mxu0 %v58
    %488 = vmatprep.subr.mxu0 %v61
    %489 = vmatpush1.msra.mxu0 %v60
    %490 = vmatprep.subr.mxu0 0.0
    %491 = vmatpush1.msra.mxu0 0.0
    %492 = vmatprep.subr.mxu0 0.0
    %493 = vmatpush1.msra.mxu0 0.0
    %494 = vmatprep.subr.mxu0 0.0
    %495 = vmatpush1.msra.mxu0 0.0
    %496 = vmatprep.subr.mxu0 0.0
    %497 = vmatpush1.msra.mxu0 0.0
    %498 = vmatprep.subr.mxu0 0.0
    %499 = vmatpush1.msra.mxu0 0.0
    %500 = vmatprep.subr.mxu0 0.0
    %501 = vmatpush1.msra.mxu0 0.0
    %502 = vmatprep.subr.mxu0 0.0
    %503 = vmatpush1.msra.mxu0 0.0
    %504 = vmatprep.subr.mxu0 0.0
    %505 = vmatpush1.msra.mxu0 0.0
    %506 = vmatprep.subr.mxu0 0.0
    %507 = vmatpush1.msra.mxu0 0.0
    %508 = vmatprep.subr.mxu0 0.0
    %509 = vmatpush1.msra.mxu0 0.0
    %510 = vmatprep.subr.mxu0 0.0
    %511 = vmatpush1.msra.mxu0 0.0
    %512 = vmatprep.mubr.f32.mxu0 %v446
    %513 = vmatmul.mubr.f32.gmra.mrb[0].mxu0 %v443
    %v514 = vpop.f32.mrb[0].mxu0
    %v515 = vadd.f32 0.0, %v514
    %v516 = vpop.f32.mrb[0].mxu0
    %v517 = vadd.f32 0.0, %v516
    %518 = vdwg.mxu0
    %v519 = vmax.f32 %v515, 0.0
    %v520 = vmax.f32 %v517, 0.0
    %s521 = scalar_lea.vmem %s2, 480
    %v522 = vld [vmem:[%s521] sm:$0xff]
    %v523 = vld [vmem:[%s521 + $0x8] sm:$0xff]
    %v524 = vld [vmem:[%s521 + $0x10] sm:$0xff]
    %v525 = vld [vmem:[%s521 + $0x18] sm:$0xff]
    %v526 = vld [vmem:[%s521 + $0x20] sm:$0xff]
    %v527 = vld [vmem:[%s521 + $0x28] sm:$0xff]
    %v528 = vld [vmem:[%s521 + $0x30] sm:$0xff]
    %v529 = vld [vmem:[%s521 + $0x38] sm:$0xff]
    %v530 = vld [vmem:[%s521 + $0x40] sm:$0xff]
    %v531 = vld [vmem:[%s521 + $0x48] sm:$0xff]
    %v532 = vld [vmem:[%s521 + $0x50] sm:$0xff]
    %v533 = vld [vmem:[%s521 + $0x58] sm:$0xff]
    %v534 = vld [vmem:[%s521 + $0x60] sm:$0xff]
    %v535 = vld [vmem:[%s521 + $0x68] sm:$0xff]
    %v536 = vld [vmem:[%s521 + $0x70] sm:$0xff]
    %v537 = vld [vmem:[%s521 + $0x78] sm:$0xff]
    %v538 = vld [vmem:[%s521 + $0x80] sm:$0xff]
    %v539 = vld [vmem:[%s521 + $0x88] sm:$0xff]
    %v540 = vld [vmem:[%s521 + $0x90] sm:$0xff]
    %v541 = vld [vmem:[%s521 + $0x98] sm:$0xff]
    %v542 = vld [vmem:[%s521 + $0xa0] sm:$0xff]
    %v543 = vld [vmem:[%s521 + $0xa8] sm:$0xff]
    %v544 = vld [vmem:[%s521 + $0xb0] sm:$0xff]
    %v545 = vld [vmem:[%s521 + $0xb8] sm:$0xff]
    %v546 = vld [vmem:[%s521 + $0xc0] sm:$0xff]
    %v547 = vld [vmem:[%s521 + $0xc8] sm:$0xff]
    %v548 = vld [vmem:[%s521 + $0xd0] sm:$0xff]
    %v549 = vld [vmem:[%s521 + $0xd8] sm:$0xff]
    %v550 = vld [vmem:[%s521 + $0xe0] sm:$0xff]
    %v551 = vld [vmem:[%s521 + $0xe8] sm:$0xff]
    %v553 = vsel %vm283, %v520, 0
    %555 = vmatprep.subr.mxu0 0.0
    %556 = vmatpush1.msra.mxu0 %v522
    %557 = vmatprep.subr.mxu0 0.0
    %558 = vmatpush1.msra.mxu0 %v523
    %559 = vmatprep.subr.mxu0 0.0
    %560 = vmatpush1.msra.mxu0 %v524
    %561 = vmatprep.subr.mxu0 0.0
    %562 = vmatpush1.msra.mxu0 %v525
    %563 = vmatprep.subr.mxu0 0.0
    %564 = vmatpush1.msra.mxu0 %v526
    %565 = vmatprep.subr.mxu0 0.0
    %566 = vmatpush1.msra.mxu0 %v527
    %567 = vmatprep.subr.mxu0 0.0
    %568 = vmatpush1.msra.mxu0 %v528
    %569 = vmatprep.subr.mxu0 0.0
    %570 = vmatpush1.msra.mxu0 %v529
    %571 = vmatprep.subr.mxu0 0.0
    %572 = vmatpush1.msra.mxu0 %v530
    %573 = vmatprep.subr.mxu0 0.0
    %574 = vmatpush1.msra.mxu0 %v531
    %575 = vmatprep.subr.mxu0 0.0
    %576 = vmatpush1.msra.mxu0 %v532
    %577 = vmatprep.subr.mxu0 0.0
    %578 = vmatpush1.msra.mxu0 %v533
    %579 = vmatprep.subr.mxu0 0.0
    %580 = vmatpush1.msra.mxu0 %v534
    %581 = vmatprep.subr.mxu0 0.0
    %582 = vmatpush1.msra.mxu0 %v535
    %583 = vmatprep.subr.mxu0 0.0
    %584 = vmatpush1.msra.mxu0 %v536
    %585 = vmatprep.subr.mxu0 0.0
    %586 = vmatpush1.msra.mxu0 %v537
    %587 = vmatprep.subr.mxu0 0.0
    %588 = vmatpush1.msra.mxu0 %v538
    %589 = vmatprep.subr.mxu0 0.0
    %590 = vmatpush1.msra.mxu0 %v539
    %591 = vmatprep.subr.mxu0 0.0
    %592 = vmatpush1.msra.mxu0 %v540
    %593 = vmatprep.subr.mxu0 0.0
    %594 = vmatpush1.msra.mxu0 %v541
    %595 = vmatprep.subr.mxu0 0.0
    %596 = vmatpush1.msra.mxu0 %v542
    %597 = vmatprep.subr.mxu0 0.0
    %598 = vmatpush1.msra.mxu0 %v543
    %599 = vmatprep.subr.mxu0 0.0
    %600 = vmatpush1.msra.mxu0 %v544
    %601 = vmatprep.subr.mxu0 0.0
    %602 = vmatpush1.msra.mxu0 %v545
    %603 = vmatprep.subr.mxu0 0.0
    %604 = vmatpush1.msra.mxu0 %v546
    %605 = vmatprep.subr.mxu0 0.0
    %606 = vmatpush1.msra.mxu0 %v547
    %607 = vmatprep.subr.mxu0 0.0
    %608 = vmatpush1.msra.mxu0 %v548
    %609 = vmatprep.subr.mxu0 0.0
    %610 = vmatpush1.msra.mxu0 %v549
    %611 = vmatprep.subr.mxu0 0.0
    %612 = vmatpush1.msra.mxu0 %v550
    %613 = vmatprep.subr.mxu0 0.0
    %614 = vmatpush1.msra.mxu0 %v551
    %615 = vmatprep.subr.mxu0 0.0
    %616 = vmatpush1.msra.mxu0 0.0
    %617 = vmatprep.subr.mxu0 0.0
    %618 = vmatpush1.msra.mxu0 0.0
    %619 = vmatprep.mubr.f32.mxu0 %v553
    %620 = vmatmul.mubr.f32.gmra.mrb[0].mxu0 %v519
    %v621 = vpop.f32.mrb[0].mxu0
    %v622 = vadd.f32 0.0, %v621
    %v623 = vpop.f32.mrb[0].mxu0
    %624 = vdwg.mxu0
    %v625 = vadd.f32 %v427, %v622
    %626 = vrot.lane.b32.xlu0 %v431, 88
    %v627 = vpop.permute.xlu0 %626
    %628 = vrot.lane.b32.xlu0 %v432, 88
    %v629 = vpop.permute.xlu0 %628
    %vm630 = vcmask 719872
    %v631 = vsel %vm630, %v627, %v629
    %v633 = vsel %vm62, %v629, 0
    %635 = vmatprep.subr.mxu0 %v21
    %636 = vmatpush1.msra.mxu0 %v20
    %637 = vmatprep.subr.mxu0 %v23
    %638 = vmatpush1.msra.mxu0 %v22
    %639 = vmatprep.subr.mxu0 %v25
    %640 = vmatpush1.msra.mxu0 %v24
    %641 = vmatprep.subr.mxu0 %v27
    %642 = vmatpush1.msra.mxu0 %v26
    %643 = vmatprep.subr.mxu0 %v29
    %644 = vmatpush1.msra.mxu0 %v28
    %645 = vmatprep.subr.mxu0 %v31
    %646 = vmatpush1.msra.mxu0 %v30
    %647 = vmatprep.subr.mxu0 %v33
    %648 = vmatpush1.msra.mxu0 %v32
    %649 = vmatprep.subr.mxu0 %v35
    %650 = vmatpush1.msra.mxu0 %v34
    %651 = vmatprep.subr.mxu0 %v37
    %652 = vmatpush1.msra.mxu0 %v36
    %653 = vmatprep.subr.mxu0 %v39
    %654 = vmatpush1.msra.mxu0 %v38
    %655 = vmatprep.subr.mxu0 %v41
    %656 = vmatpush1.msra.mxu0 %v40
    %657 = vmatprep.subr.mxu0 %v43
    %658 = vmatpush1.msra.mxu0 %v42
    %659 = vmatprep.subr.mxu0 %v45
    %660 = vmatpush1.msra.mxu0 %v44
    %661 = vmatprep.subr.mxu0 %v47
    %662 = vmatpush1.msra.mxu0 %v46
    %663 = vmatprep.subr.mxu0 %v49
    %664 = vmatpush1.msra.mxu0 %v48
    %665 = vmatprep.subr.mxu0 %v51
    %666 = vmatpush1.msra.mxu0 %v50
    %667 = vmatprep.subr.mxu0 %v53
    %668 = vmatpush1.msra.mxu0 %v52
    %669 = vmatprep.subr.mxu0 %v55
    %670 = vmatpush1.msra.mxu0 %v54
    %671 = vmatprep.subr.mxu0 %v57
    %672 = vmatpush1.msra.mxu0 %v56
    %673 = vmatprep.subr.mxu0 %v59
    %674 = vmatpush1.msra.mxu0 %v58
    %675 = vmatprep.subr.mxu0 %v61
    %676 = vmatpush1.msra.mxu0 %v60
    %677 = vmatprep.subr.mxu0 0.0
    %678 = vmatpush1.msra.mxu0 0.0
    %679 = vmatprep.subr.mxu0 0.0
    %680 = vmatpush1.msra.mxu0 0.0
    %681 = vmatprep.subr.mxu0 0.0
    %682 = vmatpush1.msra.mxu0 0.0
    %683 = vmatprep.subr.mxu0 0.0
    %684 = vmatpush1.msra.mxu0 0.0
    %685 = vmatprep.subr.mxu0 0.0
    %686 = vmatpush1.msra.mxu0 0.0
    %687 = vmatprep.subr.mxu0 0.0
    %688 = vmatpush1.msra.mxu0 0.0
    %689 = vmatprep.subr.mxu0 0.0
    %690 = vmatpush1.msra.mxu0 0.0
    %691 = vmatprep.subr.mxu0 0.0
    %692 = vmatpush1.msra.mxu0 0.0
    %693 = vmatprep.subr.mxu0 0.0
    %694 = vmatpush1.msra.mxu0 0.0
    %695 = vmatprep.subr.mxu0 0.0
    %696 = vmatpush1.msra.mxu0 0.0
    %697 = vmatprep.subr.mxu0 0.0
    %698 = vmatpush1.msra.mxu0 0.0
    %699 = vmatprep.mubr.f32.mxu0 %v633
    %700 = vmatmul.mubr.f32.gmra.mrb[0].mxu0 %v631
    %v701 = vpop.f32.mrb[0].mxu0
    %v702 = vadd.f32 0.0, %v701
    %v703 = vpop.f32.mrb[0].mxu0
    %v704 = vadd.f32 0.0, %v703
    %705 = vdwg.mxu0
    %v706 = vmax.f32 %v702, 0.0
    %v707 = vmax.f32 %v704, 0.0
    %s708 = scalar_lea.vmem %s2, 720
    %v709 = vld [vmem:[%s708] sm:$0xff]
    %v710 = vld [vmem:[%s708 + $0x8] sm:$0xff]
    %v711 = vld [vmem:[%s708 + $0x10] sm:$0xff]
    %v712 = vld [vmem:[%s708 + $0x18] sm:$0xff]
    %v713 = vld [vmem:[%s708 + $0x20] sm:$0xff]
    %v714 = vld [vmem:[%s708 + $0x28] sm:$0xff]
    %v715 = vld [vmem:[%s708 + $0x30] sm:$0xff]
    %v716 = vld [vmem:[%s708 + $0x38] sm:$0xff]
    %v717 = vld [vmem:[%s708 + $0x40] sm:$0xff]
    %v718 = vld [vmem:[%s708 + $0x48] sm:$0xff]
    %v719 = vld [vmem:[%s708 + $0x50] sm:$0xff]
    %v720 = vld [vmem:[%s708 + $0x58] sm:$0xff]
    %v721 = vld [vmem:[%s708 + $0x60] sm:$0xff]
    %v722 = vld [vmem:[%s708 + $0x68] sm:$0xff]
    %v723 = vld [vmem:[%s708 + $0x70] sm:$0xff]
    %v724 = vld [vmem:[%s708 + $0x78] sm:$0xff]
    %v725 = vld [vmem:[%s708 + $0x80] sm:$0xff]
    %v726 = vld [vmem:[%s708 + $0x88] sm:$0xff]
    %v727 = vld [vmem:[%s708 + $0x90] sm:$0xff]
    %v728 = vld [vmem:[%s708 + $0x98] sm:$0xff]
    %v729 = vld [vmem:[%s708 + $0xa0] sm:$0xff]
    %v730 = vld [vmem:[%s708 + $0xa8] sm:$0xff]
    %v731 = vld [vmem:[%s708 + $0xb0] sm:$0xff]
    %v732 = vld [vmem:[%s708 + $0xb8] sm:$0xff]
    %v733 = vld [vmem:[%s708 + $0xc0] sm:$0xff]
    %v734 = vld [vmem:[%s708 + $0xc8] sm:$0xff]
    %v735 = vld [vmem:[%s708 + $0xd0] sm:$0xff]
    %v736 = vld [vmem:[%s708 + $0xd8] sm:$0xff]
    %v737 = vld [vmem:[%s708 + $0xe0] sm:$0xff]
    %v738 = vld [vmem:[%s708 + $0xe8] sm:$0xff]
    %v740 = vsel %vm283, %v707, 0
    %742 = vmatprep.subr.mxu0 0.0
    %743 = vmatpush1.msra.mxu0 %v709
    %744 = vmatprep.subr.mxu0 0.0
    %745 = vmatpush1.msra.mxu0 %v710
    %746 = vmatprep.subr.mxu0 0.0
    %747 = vmatpush1.msra.mxu0 %v711
    %748 = vmatprep.subr.mxu0 0.0
    %749 = vmatpush1.msra.mxu0 %v712
    %750 = vmatprep.subr.mxu0 0.0
    %751 = vmatpush1.msra.mxu0 %v713
    %752 = vmatprep.subr.mxu0 0.0
    %753 = vmatpush1.msra.mxu0 %v714
    %754 = vmatprep.subr.mxu0 0.0
    %755 = vmatpush1.msra.mxu0 %v715
    %756 = vmatprep.subr.mxu0 0.0
    %757 = vmatpush1.msra.mxu0 %v716
    %758 = vmatprep.subr.mxu0 0.0
    %759 = vmatpush1.msra.mxu0 %v717
    %760 = vmatprep.subr.mxu0 0.0
    %761 = vmatpush1.msra.mxu0 %v718
    %762 = vmatprep.subr.mxu0 0.0
    %763 = vmatpush1.msra.mxu0 %v719
    %764 = vmatprep.subr.mxu0 0.0
    %765 = vmatpush1.msra.mxu0 %v720
    %766 = vmatprep.subr.mxu0 0.0
    %767 = vmatpush1.msra.mxu0 %v721
    %768 = vmatprep.subr.mxu0 0.0
    %769 = vmatpush1.msra.mxu0 %v722
    %770 = vmatprep.subr.mxu0 0.0
    %771 = vmatpush1.msra.mxu0 %v723
    %772 = vmatprep.subr.mxu0 0.0
    %773 = vmatpush1.msra.mxu0 %v724
    %774 = vmatprep.subr.mxu0 0.0
    %775 = vmatpush1.msra.mxu0 %v725
    %776 = vmatprep.subr.mxu0 0.0
    %777 = vmatpush1.msra.mxu0 %v726
    %778 = vmatprep.subr.mxu0 0.0
    %779 = vmatpush1.msra.mxu0 %v727
    %780 = vmatprep.subr.mxu0 0.0
    %781 = vmatpush1.msra.mxu0 %v728
    %782 = vmatprep.subr.mxu0 0.0
    %783 = vmatpush1.msra.mxu0 %v729
    %784 = vmatprep.subr.mxu0 0.0
    %785 = vmatpush1.msra.mxu0 %v730
    %786 = vmatprep.subr.mxu0 0.0
    %787 = vmatpush1.msra.mxu0 %v731
    %788 = vmatprep.subr.mxu0 0.0
    %789 = vmatpush1.msra.mxu0 %v732
    %790 = vmatprep.subr.mxu0 0.0
    %791 = vmatpush1.msra.mxu0 %v733
    %792 = vmatprep.subr.mxu0 0.0
    %793 = vmatpush1.msra.mxu0 %v734
    %794 = vmatprep.subr.mxu0 0.0
    %795 = vmatpush1.msra.mxu0 %v735
    %796 = vmatprep.subr.mxu0 0.0
    %797 = vmatpush1.msra.mxu0 %v736
    %798 = vmatprep.subr.mxu0 0.0
    %799 = vmatpush1.msra.mxu0 %v737
    %800 = vmatprep.subr.mxu0 0.0
    %801 = vmatpush1.msra.mxu0 %v738
    %802 = vmatprep.subr.mxu0 0.0
    %803 = vmatpush1.msra.mxu0 0.0
    %804 = vmatprep.subr.mxu0 0.0
    %805 = vmatpush1.msra.mxu0 0.0
    %806 = vmatprep.mubr.f32.mxu0 %v740
    %807 = vmatmul.mubr.f32.gmra.mrb[0].mxu0 %v706
    %v808 = vpop.f32.mrb[0].mxu0
    %v809 = vadd.f32 0.0, %v808
    %v810 = vpop.f32.mrb[0].mxu0
    %811 = vdwg.mxu0
    %v812 = vadd.f32 %v625, %v809
    %v813 = vld [vmem:[%s0 + $0x8] sm:$0xff]
    %v814 = vld [vmem:[%s0 + $0x10] sm:$0xff]
    %v815 = vld [vmem:[%s0 + $0x18] sm:$0xff]
    %819 = vrot.lane.b32.xlu0 %v813, 32
    %v820 = vpop.permute.xlu0 %819
    %821 = vrot.lane.b32.xlu0 %v814, 32
    %v822 = vpop.permute.xlu0 %821
    %823 = vrot.lane.b32.xlu0 %v815, 32
    %v824 = vpop.permute.xlu0 %823
    %vm825 = vcmask 261120
    %v826 = vsel %vm825, %v820, %v822
    %v827 = vsel %vm825, %v822, %v824
    %v829 = vsel %vm62, %v827, 0
    %831 = vmatprep.subr.mxu0 %v21
    %832 = vmatpush1.msra.mxu0 %v20
    %833 = vmatprep.subr.mxu0 %v23
    %834 = vmatpush1.msra.mxu0 %v22
    %835 = vmatprep.subr.mxu0 %v25
    %836 = vmatpush1.msra.mxu0 %v24
    %837 = vmatprep.subr.mxu0 %v27
    %838 = vmatpush1.msra.mxu0 %v26
    %839 = vmatprep.subr.mxu0 %v29
    %840 = vmatpush1.msra.mxu0 %v28
    %841 = vmatprep.subr.mxu0 %v31
    %842 = vmatpush1.msra.mxu0 %v30
    %843 = vmatprep.subr.mxu0 %v33
    %844 = vmatpush1.msra.mxu0 %v32
    %845 = vmatprep.subr.mxu0 %v35
    %846 = vmatpush1.msra.mxu0 %v34
    %847 = vmatprep.subr.mxu0 %v37
    %848 = vmatpush1.msra.mxu0 %v36
    %849 = vmatprep.subr.mxu0 %v39
    %850 = vmatpush1.msra.mxu0 %v38
    %851 = vmatprep.subr.mxu0 %v41
    %852 = vmatpush1.msra.mxu0 %v40
    %853 = vmatprep.subr.mxu0 %v43
    %854 = vmatpush1.msra.mxu0 %v42
    %855 = vmatprep.subr.mxu0 %v45
    %856 = vmatpush1.msra.mxu0 %v44
    %857 = vmatprep.subr.mxu0 %v47
    %858 = vmatpush1.msra.mxu0 %v46
    %859 = vmatprep.subr.mxu0 %v49
    %860 = vmatpush1.msra.mxu0 %v48
    %861 = vmatprep.subr.mxu0 %v51
    %862 = vmatpush1.msra.mxu0 %v50
    %863 = vmatprep.subr.mxu0 %v53
    %864 = vmatpush1.msra.mxu0 %v52
    %865 = vmatprep.subr.mxu0 %v55
    %866 = vmatpush1.msra.mxu0 %v54
    %867 = vmatprep.subr.mxu0 %v57
    %868 = vmatpush1.msra.mxu0 %v56
    %869 = vmatprep.subr.mxu0 %v59
    %870 = vmatpush1.msra.mxu0 %v58
    %871 = vmatprep.subr.mxu0 %v61
    %872 = vmatpush1.msra.mxu0 %v60
    %873 = vmatprep.subr.mxu0 0.0
    %874 = vmatpush1.msra.mxu0 0.0
    %875 = vmatprep.subr.mxu0 0.0
    %876 = vmatpush1.msra.mxu0 0.0
    %877 = vmatprep.subr.mxu0 0.0
    %878 = vmatpush1.msra.mxu0 0.0
    %879 = vmatprep.subr.mxu0 0.0
    %880 = vmatpush1.msra.mxu0 0.0
    %881 = vmatprep.subr.mxu0 0.0
    %882 = vmatpush1.msra.mxu0 0.0
    %883 = vmatprep.subr.mxu0 0.0
    %884 = vmatpush1.msra.mxu0 0.0
    %885 = vmatprep.subr.mxu0 0.0
    %886 = vmatpush1.msra.mxu0 0.0
    %887 = vmatprep.subr.mxu0 0.0
    %888 = vmatpush1.msra.mxu0 0.0
    %889 = vmatprep.subr.mxu0 0.0
    %890 = vmatpush1.msra.mxu0 0.0
    %891 = vmatprep.subr.mxu0 0.0
    %892 = vmatpush1.msra.mxu0 0.0
    %893 = vmatprep.subr.mxu0 0.0
    %894 = vmatpush1.msra.mxu0 0.0
    %895 = vmatprep.mubr.f32.mxu0 %v829
    %896 = vmatmul.mubr.f32.gmra.mrb[0].mxu0 %v826
    %v897 = vpop.f32.mrb[0].mxu0
    %v898 = vadd.f32 0.0, %v897
    %v899 = vpop.f32.mrb[0].mxu0
    %v900 = vadd.f32 0.0, %v899
    %901 = vdwg.mxu0
    %v902 = vmax.f32 %v898, 0.0
    %v903 = vmax.f32 %v900, 0.0
    %s904 = scalar_lea.vmem %s2, 960
    %v905 = vld [vmem:[%s904] sm:$0xff]
    %v906 = vld [vmem:[%s904 + $0x8] sm:$0xff]
    %v907 = vld [vmem:[%s904 + $0x10] sm:$0xff]
    %v908 = vld [vmem:[%s904 + $0x18] sm:$0xff]
    %v909 = vld [vmem:[%s904 + $0x20] sm:$0xff]
    %v910 = vld [vmem:[%s904 + $0x28] sm:$0xff]
    %v911 = vld [vmem:[%s904 + $0x30] sm:$0xff]
    %v912 = vld [vmem:[%s904 + $0x38] sm:$0xff]
    %v913 = vld [vmem:[%s904 + $0x40] sm:$0xff]
    %v914 = vld [vmem:[%s904 + $0x48] sm:$0xff]
    %v915 = vld [vmem:[%s904 + $0x50] sm:$0xff]
    %v916 = vld [vmem:[%s904 + $0x58] sm:$0xff]
    %v917 = vld [vmem:[%s904 + $0x60] sm:$0xff]
    %v918 = vld [vmem:[%s904 + $0x68] sm:$0xff]
    %v919 = vld [vmem:[%s904 + $0x70] sm:$0xff]
    %v920 = vld [vmem:[%s904 + $0x78] sm:$0xff]
    %v921 = vld [vmem:[%s904 + $0x80] sm:$0xff]
    %v922 = vld [vmem:[%s904 + $0x88] sm:$0xff]
    %v923 = vld [vmem:[%s904 + $0x90] sm:$0xff]
    %v924 = vld [vmem:[%s904 + $0x98] sm:$0xff]
    %v925 = vld [vmem:[%s904 + $0xa0] sm:$0xff]
    %v926 = vld [vmem:[%s904 + $0xa8] sm:$0xff]
    %v927 = vld [vmem:[%s904 + $0xb0] sm:$0xff]
    %v928 = vld [vmem:[%s904 + $0xb8] sm:$0xff]
    %v929 = vld [vmem:[%s904 + $0xc0] sm:$0xff]
    %v930 = vld [vmem:[%s904 + $0xc8] sm:$0xff]
    %v931 = vld [vmem:[%s904 + $0xd0] sm:$0xff]
    %v932 = vld [vmem:[%s904 + $0xd8] sm:$0xff]
    %v933 = vld [vmem:[%s904 + $0xe0] sm:$0xff]
    %v934 = vld [vmem:[%s904 + $0xe8] sm:$0xff]
    %v936 = vsel %vm283, %v903, 0
    %938 = vmatprep.subr.mxu0 0.0
    %939 = vmatpush1.msra.mxu0 %v905
    %940 = vmatprep.subr.mxu0 0.0
    %941 = vmatpush1.msra.mxu0 %v906
    %942 = vmatprep.subr.mxu0 0.0
    %943 = vmatpush1.msra.mxu0 %v907
    %944 = vmatprep.subr.mxu0 0.0
    %945 = vmatpush1.msra.mxu0 %v908
    %946 = vmatprep.subr.mxu0 0.0
    %947 = vmatpush1.msra.mxu0 %v909
    %948 = vmatprep.subr.mxu0 0.0
    %949 = vmatpush1.msra.mxu0 %v910
    %950 = vmatprep.subr.mxu0 0.0
    %951 = vmatpush1.msra.mxu0 %v911
    %952 = vmatprep.subr.mxu0 0.0
    %953 = vmatpush1.msra.mxu0 %v912
    %954 = vmatprep.subr.mxu0 0.0
    %955 = vmatpush1.msra.mxu0 %v913
    %956 = vmatprep.subr.mxu0 0.0
    %957 = vmatpush1.msra.mxu0 %v914
    %958 = vmatprep.subr.mxu0 0.0
    %959 = vmatpush1.msra.mxu0 %v915
    %960 = vmatprep.subr.mxu0 0.0
    %961 = vmatpush1.msra.mxu0 %v916
    %962 = vmatprep.subr.mxu0 0.0
    %963 = vmatpush1.msra.mxu0 %v917
    %964 = vmatprep.subr.mxu0 0.0
    %965 = vmatpush1.msra.mxu0 %v918
    %966 = vmatprep.subr.mxu0 0.0
    %967 = vmatpush1.msra.mxu0 %v919
    %968 = vmatprep.subr.mxu0 0.0
    %969 = vmatpush1.msra.mxu0 %v920
    %970 = vmatprep.subr.mxu0 0.0
    %971 = vmatpush1.msra.mxu0 %v921
    %972 = vmatprep.subr.mxu0 0.0
    %973 = vmatpush1.msra.mxu0 %v922
    %974 = vmatprep.subr.mxu0 0.0
    %975 = vmatpush1.msra.mxu0 %v923
    %976 = vmatprep.subr.mxu0 0.0
    %977 = vmatpush1.msra.mxu0 %v924
    %978 = vmatprep.subr.mxu0 0.0
    %979 = vmatpush1.msra.mxu0 %v925
    %980 = vmatprep.subr.mxu0 0.0
    %981 = vmatpush1.msra.mxu0 %v926
    %982 = vmatprep.subr.mxu0 0.0
    %983 = vmatpush1.msra.mxu0 %v927
    %984 = vmatprep.subr.mxu0 0.0
    %985 = vmatpush1.msra.mxu0 %v928
    %986 = vmatprep.subr.mxu0 0.0
    %987 = vmatpush1.msra.mxu0 %v929
    %988 = vmatprep.subr.mxu0 0.0
    %989 = vmatpush1.msra.mxu0 %v930
    %990 = vmatprep.subr.mxu0 0.0
    %991 = vmatpush1.msra.mxu0 %v931
    %992 = vmatprep.subr.mxu0 0.0
    %993 = vmatpush1.msra.mxu0 %v932
    %994 = vmatprep.subr.mxu0 0.0
    %995 = vmatpush1.msra.mxu0 %v933
    %996 = vmatprep.subr.mxu0 0.0
    %997 = vmatpush1.msra.mxu0 %v934
    %998 = vmatprep.subr.mxu0 0.0
    %999 = vmatpush1.msra.mxu0 0.0
    %1000 = vmatprep.subr.mxu0 0.0
    %1001 = vmatpush1.msra.mxu0 0.0
    %1002 = vmatprep.mubr.f32.mxu0 %v936
    %1003 = vmatmul.mubr.f32.gmra.mrb[0].mxu0 %v902
    %v1004 = vpop.f32.mrb[0].mxu0
    %v1005 = vadd.f32 0.0, %v1004
    %v1006 = vpop.f32.mrb[0].mxu0
    %1007 = vdwg.mxu0
    %v1008 = vadd.f32 %v812, %v1005
    %1009 = vrot.lane.b32.xlu0 %v814, 104
    %v1010 = vpop.permute.xlu0 %1009
    %1011 = vrot.lane.b32.xlu0 %v815, 104
    %v1012 = vpop.permute.xlu0 %1011
    %vm1013 = vcmask 850944
    %v1014 = vsel %vm1013, %v1010, %v1012
    %v1016 = vsel %vm62, %v1012, 0
    %1018 = vmatprep.subr.mxu0 %v21
    %1019 = vmatpush1.msra.mxu0 %v20
    %1020 = vmatprep.subr.mxu0 %v23
    %1021 = vmatpush1.msra.mxu0 %v22
    %1022 = vmatprep.subr.mxu0 %v25
    %1023 = vmatpush1.msra.mxu0 %v24
    %1024 = vmatprep.subr.mxu0 %v27
    %1025 = vmatpush1.msra.mxu0 %v26
    %1026 = vmatprep.subr.mxu0 %v29
    %1027 = vmatpush1.msra.mxu0 %v28
    %1028 = vmatprep.subr.mxu0 %v31
    %1029 = vmatpush1.msra.mxu0 %v30
    %1030 = vmatprep.subr.mxu0 %v33
    %1031 = vmatpush1.msra.mxu0 %v32
    %1032 = vmatprep.subr.mxu0 %v35
    %1033 = vmatpush1.msra.mxu0 %v34
    %1034 = vmatprep.subr.mxu0 %v37
    %1035 = vmatpush1.msra.mxu0 %v36
    %1036 = vmatprep.subr.mxu0 %v39
    %1037 = vmatpush1.msra.mxu0 %v38
    %1038 = vmatprep.subr.mxu0 %v41
    %1039 = vmatpush1.msra.mxu0 %v40
    %1040 = vmatprep.subr.mxu0 %v43
    %1041 = vmatpush1.msra.mxu0 %v42
    %1042 = vmatprep.subr.mxu0 %v45
    %1043 = vmatpush1.msra.mxu0 %v44
    %1044 = vmatprep.subr.mxu0 %v47
    %1045 = vmatpush1.msra.mxu0 %v46
    %1046 = vmatprep.subr.mxu0 %v49
    %1047 = vmatpush1.msra.mxu0 %v48
    %1048 = vmatprep.subr.mxu0 %v51
    %1049 = vmatpush1.msra.mxu0 %v50
    %1050 = vmatprep.subr.mxu0 %v53
    %1051 = vmatpush1.msra.mxu0 %v52
    %1052 = vmatprep.subr.mxu0 %v55
    %1053 = vmatpush1.msra.mxu0 %v54
    %1054 = vmatprep.subr.mxu0 %v57
    %1055 = vmatpush1.msra.mxu0 %v56
    %1056 = vmatprep.subr.mxu0 %v59
    %1057 = vmatpush1.msra.mxu0 %v58
    %1058 = vmatprep.subr.mxu0 %v61
    %1059 = vmatpush1.msra.mxu0 %v60
    %1060 = vmatprep.subr.mxu0 0.0
    %1061 = vmatpush1.msra.mxu0 0.0
    %1062 = vmatprep.subr.mxu0 0.0
    %1063 = vmatpush1.msra.mxu0 0.0
    %1064 = vmatprep.subr.mxu0 0.0
    %1065 = vmatpush1.msra.mxu0 0.0
    %1066 = vmatprep.subr.mxu0 0.0
    %1067 = vmatpush1.msra.mxu0 0.0
    %1068 = vmatprep.subr.mxu0 0.0
    %1069 = vmatpush1.msra.mxu0 0.0
    %1070 = vmatprep.subr.mxu0 0.0
    %1071 = vmatpush1.msra.mxu0 0.0
    %1072 = vmatprep.subr.mxu0 0.0
    %1073 = vmatpush1.msra.mxu0 0.0
    %1074 = vmatprep.subr.mxu0 0.0
    %1075 = vmatpush1.msra.mxu0 0.0
    %1076 = vmatprep.subr.mxu0 0.0
    %1077 = vmatpush1.msra.mxu0 0.0
    %1078 = vmatprep.subr.mxu0 0.0
    %1079 = vmatpush1.msra.mxu0 0.0
    %1080 = vmatprep.subr.mxu0 0.0
    %1081 = vmatpush1.msra.mxu0 0.0
    %1082 = vmatprep.mubr.f32.mxu0 %v1016
    %1083 = vmatmul.mubr.f32.gmra.mrb[0].mxu0 %v1014
    %v1084 = vpop.f32.mrb[0].mxu0
    %v1085 = vadd.f32 0.0, %v1084
    %v1086 = vpop.f32.mrb[0].mxu0
    %v1087 = vadd.f32 0.0, %v1086
    %1088 = vdwg.mxu0
    %v1089 = vmax.f32 %v1085, 0.0
    %v1090 = vmax.f32 %v1087, 0.0
    %s1091 = scalar_lea.vmem %s2, 1200
    %v1092 = vld [vmem:[%s1091] sm:$0xff]
    %v1093 = vld [vmem:[%s1091 + $0x8] sm:$0xff]
    %v1094 = vld [vmem:[%s1091 + $0x10] sm:$0xff]
    %v1095 = vld [vmem:[%s1091 + $0x18] sm:$0xff]
    %v1096 = vld [vmem:[%s1091 + $0x20] sm:$0xff]
    %v1097 = vld [vmem:[%s1091 + $0x28] sm:$0xff]
    %v1098 = vld [vmem:[%s1091 + $0x30] sm:$0xff]
    %v1099 = vld [vmem:[%s1091 + $0x38] sm:$0xff]
    %v1100 = vld [vmem:[%s1091 + $0x40] sm:$0xff]
    %v1101 = vld [vmem:[%s1091 + $0x48] sm:$0xff]
    %v1102 = vld [vmem:[%s1091 + $0x50] sm:$0xff]
    %v1103 = vld [vmem:[%s1091 + $0x58] sm:$0xff]
    %v1104 = vld [vmem:[%s1091 + $0x60] sm:$0xff]
    %v1105 = vld [vmem:[%s1091 + $0x68] sm:$0xff]
    %v1106 = vld [vmem:[%s1091 + $0x70] sm:$0xff]
    %v1107 = vld [vmem:[%s1091 + $0x78] sm:$0xff]
    %v1108 = vld [vmem:[%s1091 + $0x80] sm:$0xff]
    %v1109 = vld [vmem:[%s1091 + $0x88] sm:$0xff]
    %v1110 = vld [vmem:[%s1091 + $0x90] sm:$0xff]
    %v1111 = vld [vmem:[%s1091 + $0x98] sm:$0xff]
    %v1112 = vld [vmem:[%s1091 + $0xa0] sm:$0xff]
    %v1113 = vld [vmem:[%s1091 + $0xa8] sm:$0xff]
    %v1114 = vld [vmem:[%s1091 + $0xb0] sm:$0xff]
    %v1115 = vld [vmem:[%s1091 + $0xb8] sm:$0xff]
    %v1116 = vld [vmem:[%s1091 + $0xc0] sm:$0xff]
    %v1117 = vld [vmem:[%s1091 + $0xc8] sm:$0xff]
    %v1118 = vld [vmem:[%s1091 + $0xd0] sm:$0xff]
    %v1119 = vld [vmem:[%s1091 + $0xd8] sm:$0xff]
    %v1120 = vld [vmem:[%s1091 + $0xe0] sm:$0xff]
    %v1121 = vld [vmem:[%s1091 + $0xe8] sm:$0xff]
    %v1123 = vsel %vm283, %v1090, 0
    %1125 = vmatprep.subr.mxu0 0.0
    %1126 = vmatpush1.msra.mxu0 %v1092
    %1127 = vmatprep.subr.mxu0 0.0
    %1128 = vmatpush1.msra.mxu0 %v1093
    %1129 = vmatprep.subr.mxu0 0.0
    %1130 = vmatpush1.msra.mxu0 %v1094
    %1131 = vmatprep.subr.mxu0 0.0
    %1132 = vmatpush1.msra.mxu0 %v1095
    %1133 = vmatprep.subr.mxu0 0.0
    %1134 = vmatpush1.msra.mxu0 %v1096
    %1135 = vmatprep.subr.mxu0 0.0
    %1136 = vmatpush1.msra.mxu0 %v1097
    %1137 = vmatprep.subr.mxu0 0.0
    %1138 = vmatpush1.msra.mxu0 %v1098
    %1139 = vmatprep.subr.mxu0 0.0
    %1140 = vmatpush1.msra.mxu0 %v1099
    %1141 = vmatprep.subr.mxu0 0.0
    %1142 = vmatpush1.msra.mxu0 %v1100
    %1143 = vmatprep.subr.mxu0 0.0
    %1144 = vmatpush1.msra.mxu0 %v1101
    %1145 = vmatprep.subr.mxu0 0.0
    %1146 = vmatpush1.msra.mxu0 %v1102
    %1147 = vmatprep.subr.mxu0 0.0
    %1148 = vmatpush1.msra.mxu0 %v1103
    %1149 = vmatprep.subr.mxu0 0.0
    %1150 = vmatpush1.msra.mxu0 %v1104
    %1151 = vmatprep.subr.mxu0 0.0
    %1152 = vmatpush1.msra.mxu0 %v1105
    %1153 = vmatprep.subr.mxu0 0.0
    %1154 = vmatpush1.msra.mxu0 %v1106
    %1155 = vmatprep.subr.mxu0 0.0
    %1156 = vmatpush1.msra.mxu0 %v1107
    %1157 = vmatprep.subr.mxu0 0.0
    %1158 = vmatpush1.msra.mxu0 %v1108
    %1159 = vmatprep.subr.mxu0 0.0
    %1160 = vmatpush1.msra.mxu0 %v1109
    %1161 = vmatprep.subr.mxu0 0.0
    %1162 = vmatpush1.msra.mxu0 %v1110
    %1163 = vmatprep.subr.mxu0 0.0
    %1164 = vmatpush1.msra.mxu0 %v1111
    %1165 = vmatprep.subr.mxu0 0.0
    %1166 = vmatpush1.msra.mxu0 %v1112
    %1167 = vmatprep.subr.mxu0 0.0
    %1168 = vmatpush1.msra.mxu0 %v1113
    %1169 = vmatprep.subr.mxu0 0.0
    %1170 = vmatpush1.msra.mxu0 %v1114
    %1171 = vmatprep.subr.mxu0 0.0
    %1172 = vmatpush1.msra.mxu0 %v1115
    %1173 = vmatprep.subr.mxu0 0.0
    %1174 = vmatpush1.msra.mxu0 %v1116
    %1175 = vmatprep.subr.mxu0 0.0
    %1176 = vmatpush1.msra.mxu0 %v1117
    %1177 = vmatprep.subr.mxu0 0.0
    %1178 = vmatpush1.msra.mxu0 %v1118
    %1179 = vmatprep.subr.mxu0 0.0
    %1180 = vmatpush1.msra.mxu0 %v1119
    %1181 = vmatprep.subr.mxu0 0.0
    %1182 = vmatpush1.msra.mxu0 %v1120
    %1183 = vmatprep.subr.mxu0 0.0
    %1184 = vmatpush1.msra.mxu0 %v1121
    %1185 = vmatprep.subr.mxu0 0.0
    %1186 = vmatpush1.msra.mxu0 0.0
    %1187 = vmatprep.subr.mxu0 0.0
    %1188 = vmatpush1.msra.mxu0 0.0
    %1189 = vmatprep.mubr.f32.mxu0 %v1123
    %1190 = vmatmul.mubr.f32.gmra.mrb[0].mxu0 %v1089
    %v1191 = vpop.f32.mrb[0].mxu0
    %v1192 = vadd.f32 0.0, %v1191
    %v1193 = vpop.f32.mrb[0].mxu0
    %1194 = vdwg.mxu0
    %v1195 = vadd.f32 %v1008, %v1192
    %1196 = vrot.lane.b32.xlu0 %v814, 48
    %v1197 = vpop.permute.xlu0 %1196
    %1198 = vrot.lane.b32.xlu0 %v815, 48
    %v1199 = vpop.permute.xlu0 %1198
    %vm1200 = vcmask 392192
    %v1201 = vsel %vm1200, %v1197, %v1199
    %v1203 = vsel %vm62, %v1199, 0
    %1205 = vmatprep.subr.mxu0 %v21
    %1206 = vmatpush1.msra.mxu0 %v20
    %1207 = vmatprep.subr.mxu0 %v23
    %1208 = vmatpush1.msra.mxu0 %v22
    %1209 = vmatprep.subr.mxu0 %v25
    %1210 = vmatpush1.msra.mxu0 %v24
    %1211 = vmatprep.subr.mxu0 %v27
    %1212 = vmatpush1.msra.mxu0 %v26
    %1213 = vmatprep.subr.mxu0 %v29
    %1214 = vmatpush1.msra.mxu0 %v28
    %1215 = vmatprep.subr.mxu0 %v31
    %1216 = vmatpush1.msra.mxu0 %v30
    %1217 = vmatprep.subr.mxu0 %v33
    %1218 = vmatpush1.msra.mxu0 %v32
    %1219 = vmatprep.subr.mxu0 %v35
    %1220 = vmatpush1.msra.mxu0 %v34
    %1221 = vmatprep.subr.mxu0 %v37
    %1222 = vmatpush1.msra.mxu0 %v36
    %1223 = vmatprep.subr.mxu0 %v39
    %1224 = vmatpush1.msra.mxu0 %v38
    %1225 = vmatprep.subr.mxu0 %v41
    %1226 = vmatpush1.msra.mxu0 %v40
    %1227 = vmatprep.subr.mxu0 %v43
    %1228 = vmatpush1.msra.mxu0 %v42
    %1229 = vmatprep.subr.mxu0 %v45
    %1230 = vmatpush1.msra.mxu0 %v44
    %1231 = vmatprep.subr.mxu0 %v47
    %1232 = vmatpush1.msra.mxu0 %v46
    %1233 = vmatprep.subr.mxu0 %v49
    %1234 = vmatpush1.msra.mxu0 %v48
    %1235 = vmatprep.subr.mxu0 %v51
    %1236 = vmatpush1.msra.mxu0 %v50
    %1237 = vmatprep.subr.mxu0 %v53
    %1238 = vmatpush1.msra.mxu0 %v52
    %1239 = vmatprep.subr.mxu0 %v55
    %1240 = vmatpush1.msra.mxu0 %v54
    %1241 = vmatprep.subr.mxu0 %v57
    %1242 = vmatpush1.msra.mxu0 %v56
    %1243 = vmatprep.subr.mxu0 %v59
    %1244 = vmatpush1.msra.mxu0 %v58
    %1245 = vmatprep.subr.mxu0 %v61
    %1246 = vmatpush1.msra.mxu0 %v60
    %1247 = vmatprep.subr.mxu0 0.0
    %1248 = vmatpush1.msra.mxu0 0.0
    %1249 = vmatprep.subr.mxu0 0.0
    %1250 = vmatpush1.msra.mxu0 0.0
    %1251 = vmatprep.subr.mxu0 0.0
    %1252 = vmatpush1.msra.mxu0 0.0
    %1253 = vmatprep.subr.mxu0 0.0
    %1254 = vmatpush1.msra.mxu0 0.0
    %1255 = vmatprep.subr.mxu0 0.0
    %1256 = vmatpush1.msra.mxu0 0.0
    %1257 = vmatprep.subr.mxu0 0.0
    %1258 = vmatpush1.msra.mxu0 0.0
    %1259 = vmatprep.subr.mxu0 0.0
    %1260 = vmatpush1.msra.mxu0 0.0
    %1261 = vmatprep.subr.mxu0 0.0
    %1262 = vmatpush1.msra.mxu0 0.0
    %1263 = vmatprep.subr.mxu0 0.0
    %1264 = vmatpush1.msra.mxu0 0.0
    %1265 = vmatprep.subr.mxu0 0.0
    %1266 = vmatpush1.msra.mxu0 0.0
    %1267 = vmatprep.subr.mxu0 0.0
    %1268 = vmatpush1.msra.mxu0 0.0
    %1269 = vmatprep.mubr.f32.mxu0 %v1203
    %1270 = vmatmul.mubr.f32.gmra.mrb[0].mxu0 %v1201
    %v1271 = vpop.f32.mrb[0].mxu0
    %v1272 = vadd.f32 0.0, %v1271
    %v1273 = vpop.f32.mrb[0].mxu0
    %v1274 = vadd.f32 0.0, %v1273
    %1275 = vdwg.mxu0
    %v1276 = vmax.f32 %v1272, 0.0
    %v1277 = vmax.f32 %v1274, 0.0
    %s1278 = scalar_lea.vmem %s2, 1440
    %v1279 = vld [vmem:[%s1278] sm:$0xff]
    %v1280 = vld [vmem:[%s1278 + $0x8] sm:$0xff]
    %v1281 = vld [vmem:[%s1278 + $0x10] sm:$0xff]
    %v1282 = vld [vmem:[%s1278 + $0x18] sm:$0xff]
    %v1283 = vld [vmem:[%s1278 + $0x20] sm:$0xff]
    %v1284 = vld [vmem:[%s1278 + $0x28] sm:$0xff]
    %v1285 = vld [vmem:[%s1278 + $0x30] sm:$0xff]
    %v1286 = vld [vmem:[%s1278 + $0x38] sm:$0xff]
    %v1287 = vld [vmem:[%s1278 + $0x40] sm:$0xff]
    %v1288 = vld [vmem:[%s1278 + $0x48] sm:$0xff]
    %v1289 = vld [vmem:[%s1278 + $0x50] sm:$0xff]
    %v1290 = vld [vmem:[%s1278 + $0x58] sm:$0xff]
    %v1291 = vld [vmem:[%s1278 + $0x60] sm:$0xff]
    %v1292 = vld [vmem:[%s1278 + $0x68] sm:$0xff]
    %v1293 = vld [vmem:[%s1278 + $0x70] sm:$0xff]
    %v1294 = vld [vmem:[%s1278 + $0x78] sm:$0xff]
    %v1295 = vld [vmem:[%s1278 + $0x80] sm:$0xff]
    %v1296 = vld [vmem:[%s1278 + $0x88] sm:$0xff]
    %v1297 = vld [vmem:[%s1278 + $0x90] sm:$0xff]
    %v1298 = vld [vmem:[%s1278 + $0x98] sm:$0xff]
    %v1299 = vld [vmem:[%s1278 + $0xa0] sm:$0xff]
    %v1300 = vld [vmem:[%s1278 + $0xa8] sm:$0xff]
    %v1301 = vld [vmem:[%s1278 + $0xb0] sm:$0xff]
    %v1302 = vld [vmem:[%s1278 + $0xb8] sm:$0xff]
    %v1303 = vld [vmem:[%s1278 + $0xc0] sm:$0xff]
    %v1304 = vld [vmem:[%s1278 + $0xc8] sm:$0xff]
    %v1305 = vld [vmem:[%s1278 + $0xd0] sm:$0xff]
    %v1306 = vld [vmem:[%s1278 + $0xd8] sm:$0xff]
    %v1307 = vld [vmem:[%s1278 + $0xe0] sm:$0xff]
    %v1308 = vld [vmem:[%s1278 + $0xe8] sm:$0xff]
    %v1310 = vsel %vm283, %v1277, 0
    %1312 = vmatprep.subr.mxu0 0.0
    %1313 = vmatpush1.msra.mxu0 %v1279
    %1314 = vmatprep.subr.mxu0 0.0
    %1315 = vmatpush1.msra.mxu0 %v1280
    %1316 = vmatprep.subr.mxu0 0.0
    %1317 = vmatpush1.msra.mxu0 %v1281
    %1318 = vmatprep.subr.mxu0 0.0
    %1319 = vmatpush1.msra.mxu0 %v1282
    %1320 = vmatprep.subr.mxu0 0.0
    %1321 = vmatpush1.msra.mxu0 %v1283
    %1322 = vmatprep.subr.mxu0 0.0
    %1323 = vmatpush1.msra.mxu0 %v1284
    %1324 = vmatprep.subr.mxu0 0.0
    %1325 = vmatpush1.msra.mxu0 %v1285
    %1326 = vmatprep.subr.mxu0 0.0
    %1327 = vmatpush1.msra.mxu0 %v1286
    %1328 = vmatprep.subr.mxu0 0.0
    %1329 = vmatpush1.msra.mxu0 %v1287
    %1330 = vmatprep.subr.mxu0 0.0
    %1331 = vmatpush1.msra.mxu0 %v1288
    %1332 = vmatprep.subr.mxu0 0.0
    %1333 = vmatpush1.msra.mxu0 %v1289
    %1334 = vmatprep.subr.mxu0 0.0
    %1335 = vmatpush1.msra.mxu0 %v1290
    %1336 = vmatprep.subr.mxu0 0.0
    %1337 = vmatpush1.msra.mxu0 %v1291
    %1338 = vmatprep.subr.mxu0 0.0
    %1339 = vmatpush1.msra.mxu0 %v1292
    %1340 = vmatprep.subr.mxu0 0.0
    %1341 = vmatpush1.msra.mxu0 %v1293
    %1342 = vmatprep.subr.mxu0 0.0
    %1343 = vmatpush1.msra.mxu0 %v1294
    %1344 = vmatprep.subr.mxu0 0.0
    %1345 = vmatpush1.msra.mxu0 %v1295
    %1346 = vmatprep.subr.mxu0 0.0
    %1347 = vmatpush1.msra.mxu0 %v1296
    %1348 = vmatprep.subr.mxu0 0.0
    %1349 = vmatpush1.msra.mxu0 %v1297
    %1350 = vmatprep.subr.mxu0 0.0
    %1351 = vmatpush1.msra.mxu0 %v1298
    %1352 = vmatprep.subr.mxu0 0.0
    %1353 = vmatpush1.msra.mxu0 %v1299
    %1354 = vmatprep.subr.mxu0 0.0
    %1355 = vmatpush1.msra.mxu0 %v1300
    %1356 = vmatprep.subr.mxu0 0.0
    %1357 = vmatpush1.msra.mxu0 %v1301
    %1358 = vmatprep.subr.mxu0 0.0
    %1359 = vmatpush1.msra.mxu0 %v1302
    %1360 = vmatprep.subr.mxu0 0.0
    %1361 = vmatpush1.msra.mxu0 %v1303
    %1362 = vmatprep.subr.mxu0 0.0
    %1363 = vmatpush1.msra.mxu0 %v1304
    %1364 = vmatprep.subr.mxu0 0.0
    %1365 = vmatpush1.msra.mxu0 %v1305
    %1366 = vmatprep.subr.mxu0 0.0
    %1367 = vmatpush1.msra.mxu0 %v1306
    %1368 = vmatprep.subr.mxu0 0.0
    %1369 = vmatpush1.msra.mxu0 %v1307
    %1370 = vmatprep.subr.mxu0 0.0
    %1371 = vmatpush1.msra.mxu0 %v1308
    %1372 = vmatprep.subr.mxu0 0.0
    %1373 = vmatpush1.msra.mxu0 0.0
    %1374 = vmatprep.subr.mxu0 0.0
    %1375 = vmatpush1.msra.mxu0 0.0
    %1376 = vmatprep.mubr.f32.mxu0 %v1310
    %1377 = vmatmul.mubr.f32.gmra.mrb[0].mxu0 %v1276
    %v1378 = vpop.f32.mrb[0].mxu0
    %v1379 = vadd.f32 0.0, %v1378
    %v1380 = vpop.f32.mrb[0].mxu0
    %1381 = vdwg.mxu0
    %v1382 = vadd.f32 %v1195, %v1379
    %v1383 = vld [vmem:[%s0 + $0x18] sm:$0xff]
    %v1384 = vld [vmem:[%s0 + $0x20] sm:$0xff]
    %1387 = vrot.lane.b32.xlu0 %v1383, 120
    %v1388 = vpop.permute.xlu0 %1387
    %1389 = vrot.lane.b32.xlu0 %v1384, 120
    %v1390 = vpop.permute.xlu0 %1389
    %vm1391 = vcmask 982016
    %v1392 = vsel %vm1391, %v1388, %v1390
    %v1394 = vsel %vm62, %v1390, 0
    %1396 = vmatprep.subr.mxu0 %v21
    %1397 = vmatpush1.msra.mxu0 %v20
    %1398 = vmatprep.subr.mxu0 %v23
    %1399 = vmatpush1.msra.mxu0 %v22
    %1400 = vmatprep.subr.mxu0 %v25
    %1401 = vmatpush1.msra.mxu0 %v24
    %1402 = vmatprep.subr.mxu0 %v27
    %1403 = vmatpush1.msra.mxu0 %v26
    %1404 = vmatprep.subr.mxu0 %v29
    %1405 = vmatpush1.msra.mxu0 %v28
    %1406 = vmatprep.subr.mxu0 %v31
    %1407 = vmatpush1.msra.mxu0 %v30
    %1408 = vmatprep.subr.mxu0 %v33
    %1409 = vmatpush1.msra.mxu0 %v32
    %1410 = vmatprep.subr.mxu0 %v35
    %1411 = vmatpush1.msra.mxu0 %v34
    %1412 = vmatprep.subr.mxu0 %v37
    %1413 = vmatpush1.msra.mxu0 %v36
    %1414 = vmatprep.subr.mxu0 %v39
    %1415 = vmatpush1.msra.mxu0 %v38
    %1416 = vmatprep.subr.mxu0 %v41
    %1417 = vmatpush1.msra.mxu0 %v40
    %1418 = vmatprep.subr.mxu0 %v43
    %1419 = vmatpush1.msra.mxu0 %v42
    %1420 = vmatprep.subr.mxu0 %v45
    %1421 = vmatpush1.msra.mxu0 %v44
    %1422 = vmatprep.subr.mxu0 %v47
    %1423 = vmatpush1.msra.mxu0 %v46
    %1424 = vmatprep.subr.mxu0 %v49
    %1425 = vmatpush1.msra.mxu0 %v48
    %1426 = vmatprep.subr.mxu0 %v51
    %1427 = vmatpush1.msra.mxu0 %v50
    %1428 = vmatprep.subr.mxu0 %v53
    %1429 = vmatpush1.msra.mxu0 %v52
    %1430 = vmatprep.subr.mxu0 %v55
    %1431 = vmatpush1.msra.mxu0 %v54
    %1432 = vmatprep.subr.mxu0 %v57
    %1433 = vmatpush1.msra.mxu0 %v56
    %1434 = vmatprep.subr.mxu0 %v59
    %1435 = vmatpush1.msra.mxu0 %v58
    %1436 = vmatprep.subr.mxu0 %v61
    %1437 = vmatpush1.msra.mxu0 %v60
    %1438 = vmatprep.subr.mxu0 0.0
    %1439 = vmatpush1.msra.mxu0 0.0
    %1440 = vmatprep.subr.mxu0 0.0
    %1441 = vmatpush1.msra.mxu0 0.0
    %1442 = vmatprep.subr.mxu0 0.0
    %1443 = vmatpush1.msra.mxu0 0.0
    %1444 = vmatprep.subr.mxu0 0.0
    %1445 = vmatpush1.msra.mxu0 0.0
    %1446 = vmatprep.subr.mxu0 0.0
    %1447 = vmatpush1.msra.mxu0 0.0
    %1448 = vmatprep.subr.mxu0 0.0
    %1449 = vmatpush1.msra.mxu0 0.0
    %1450 = vmatprep.subr.mxu0 0.0
    %1451 = vmatpush1.msra.mxu0 0.0
    %1452 = vmatprep.subr.mxu0 0.0
    %1453 = vmatpush1.msra.mxu0 0.0
    %1454 = vmatprep.subr.mxu0 0.0
    %1455 = vmatpush1.msra.mxu0 0.0
    %1456 = vmatprep.subr.mxu0 0.0
    %1457 = vmatpush1.msra.mxu0 0.0
    %1458 = vmatprep.subr.mxu0 0.0
    %1459 = vmatpush1.msra.mxu0 0.0
    %1460 = vmatprep.mubr.f32.mxu0 %v1394
    %1461 = vmatmul.mubr.f32.gmra.mrb[0].mxu0 %v1392
    %v1462 = vpop.f32.mrb[0].mxu0
    %v1463 = vadd.f32 0.0, %v1462
    %v1464 = vpop.f32.mrb[0].mxu0
    %v1465 = vadd.f32 0.0, %v1464
    %1466 = vdwg.mxu0
    %v1467 = vmax.f32 %v1463, 0.0
    %v1468 = vmax.f32 %v1465, 0.0
    %s1469 = scalar_lea.vmem %s2, 1680
    %v1470 = vld [vmem:[%s1469] sm:$0xff]
    %v1471 = vld [vmem:[%s1469 + $0x8] sm:$0xff]
    %v1472 = vld [vmem:[%s1469 + $0x10] sm:$0xff]
    %v1473 = vld [vmem:[%s1469 + $0x18] sm:$0xff]
    %v1474 = vld [vmem:[%s1469 + $0x20] sm:$0xff]
    %v1475 = vld [vmem:[%s1469 + $0x28] sm:$0xff]
    %v1476 = vld [vmem:[%s1469 + $0x30] sm:$0xff]
    %v1477 = vld [vmem:[%s1469 + $0x38] sm:$0xff]
    %v1478 = vld [vmem:[%s1469 + $0x40] sm:$0xff]
    %v1479 = vld [vmem:[%s1469 + $0x48] sm:$0xff]
    %v1480 = vld [vmem:[%s1469 + $0x50] sm:$0xff]
    %v1481 = vld [vmem:[%s1469 + $0x58] sm:$0xff]
    %v1482 = vld [vmem:[%s1469 + $0x60] sm:$0xff]
    %v1483 = vld [vmem:[%s1469 + $0x68] sm:$0xff]
    %v1484 = vld [vmem:[%s1469 + $0x70] sm:$0xff]
    %v1485 = vld [vmem:[%s1469 + $0x78] sm:$0xff]
    %v1486 = vld [vmem:[%s1469 + $0x80] sm:$0xff]
    %v1487 = vld [vmem:[%s1469 + $0x88] sm:$0xff]
    %v1488 = vld [vmem:[%s1469 + $0x90] sm:$0xff]
    %v1489 = vld [vmem:[%s1469 + $0x98] sm:$0xff]
    %v1490 = vld [vmem:[%s1469 + $0xa0] sm:$0xff]
    %v1491 = vld [vmem:[%s1469 + $0xa8] sm:$0xff]
    %v1492 = vld [vmem:[%s1469 + $0xb0] sm:$0xff]
    %v1493 = vld [vmem:[%s1469 + $0xb8] sm:$0xff]
    %v1494 = vld [vmem:[%s1469 + $0xc0] sm:$0xff]
    %v1495 = vld [vmem:[%s1469 + $0xc8] sm:$0xff]
    %v1496 = vld [vmem:[%s1469 + $0xd0] sm:$0xff]
    %v1497 = vld [vmem:[%s1469 + $0xd8] sm:$0xff]
    %v1498 = vld [vmem:[%s1469 + $0xe0] sm:$0xff]
    %v1499 = vld [vmem:[%s1469 + $0xe8] sm:$0xff]
    %v1501 = vsel %vm283, %v1468, 0
    %1503 = vmatprep.subr.mxu0 0.0
    %1504 = vmatpush1.msra.mxu0 %v1470
    %1505 = vmatprep.subr.mxu0 0.0
    %1506 = vmatpush1.msra.mxu0 %v1471
    %1507 = vmatprep.subr.mxu0 0.0
    %1508 = vmatpush1.msra.mxu0 %v1472
    %1509 = vmatprep.subr.mxu0 0.0
    %1510 = vmatpush1.msra.mxu0 %v1473
    %1511 = vmatprep.subr.mxu0 0.0
    %1512 = vmatpush1.msra.mxu0 %v1474
    %1513 = vmatprep.subr.mxu0 0.0
    %1514 = vmatpush1.msra.mxu0 %v1475
    %1515 = vmatprep.subr.mxu0 0.0
    %1516 = vmatpush1.msra.mxu0 %v1476
    %1517 = vmatprep.subr.mxu0 0.0
    %1518 = vmatpush1.msra.mxu0 %v1477
    %1519 = vmatprep.subr.mxu0 0.0
    %1520 = vmatpush1.msra.mxu0 %v1478
    %1521 = vmatprep.subr.mxu0 0.0
    %1522 = vmatpush1.msra.mxu0 %v1479
    %1523 = vmatprep.subr.mxu0 0.0
    %1524 = vmatpush1.msra.mxu0 %v1480
    %1525 = vmatprep.subr.mxu0 0.0
    %1526 = vmatpush1.msra.mxu0 %v1481
    %1527 = vmatprep.subr.mxu0 0.0
    %1528 = vmatpush1.msra.mxu0 %v1482
    %1529 = vmatprep.subr.mxu0 0.0
    %1530 = vmatpush1.msra.mxu0 %v1483
    %1531 = vmatprep.subr.mxu0 0.0
    %1532 = vmatpush1.msra.mxu0 %v1484
    %1533 = vmatprep.subr.mxu0 0.0
    %1534 = vmatpush1.msra.mxu0 %v1485
    %1535 = vmatprep.subr.mxu0 0.0
    %1536 = vmatpush1.msra.mxu0 %v1486
    %1537 = vmatprep.subr.mxu0 0.0
    %1538 = vmatpush1.msra.mxu0 %v1487
    %1539 = vmatprep.subr.mxu0 0.0
    %1540 = vmatpush1.msra.mxu0 %v1488
    %1541 = vmatprep.subr.mxu0 0.0
    %1542 = vmatpush1.msra.mxu0 %v1489
    %1543 = vmatprep.subr.mxu0 0.0
    %1544 = vmatpush1.msra.mxu0 %v1490
    %1545 = vmatprep.subr.mxu0 0.0
    %1546 = vmatpush1.msra.mxu0 %v1491
    %1547 = vmatprep.subr.mxu0 0.0
    %1548 = vmatpush1.msra.mxu0 %v1492
    %1549 = vmatprep.subr.mxu0 0.0
    %1550 = vmatpush1.msra.mxu0 %v1493
    %1551 = vmatprep.subr.mxu0 0.0
    %1552 = vmatpush1.msra.mxu0 %v1494
    %1553 = vmatprep.subr.mxu0 0.0
    %1554 = vmatpush1.msra.mxu0 %v1495
    %1555 = vmatprep.subr.mxu0 0.0
    %1556 = vmatpush1.msra.mxu0 %v1496
    %1557 = vmatprep.subr.mxu0 0.0
    %1558 = vmatpush1.msra.mxu0 %v1497
    %1559 = vmatprep.subr.mxu0 0.0
    %1560 = vmatpush1.msra.mxu0 %v1498
    %1561 = vmatprep.subr.mxu0 0.0
    %1562 = vmatpush1.msra.mxu0 %v1499
    %1563 = vmatprep.subr.mxu0 0.0
    %1564 = vmatpush1.msra.mxu0 0.0
    %1565 = vmatprep.subr.mxu0 0.0
    %1566 = vmatpush1.msra.mxu0 0.0
    %1567 = vmatprep.mubr.f32.mxu0 %v1501
    %1568 = vmatmul.mubr.f32.gmra.mrb[0].mxu0 %v1467
    %v1569 = vpop.f32.mrb[0].mxu0
    %v1570 = vadd.f32 0.0, %v1569
    %v1571 = vpop.f32.mrb[0].mxu0
    %1572 = vdwg.mxu0
    %v1573 = vadd.f32 %v1382, %v1570
    %1574 = vrot.lane.b32.xlu0 %v1383, 64
    %v1575 = vpop.permute.xlu0 %1574
    %1576 = vrot.lane.b32.xlu0 %v1384, 64
    %v1577 = vpop.permute.xlu0 %1576
    %vm1578 = vcmask 523264
    %v1579 = vsel %vm1578, %v1575, %v1577
    %v1581 = vsel %vm62, %v1577, 0
    %1583 = vmatprep.subr.mxu0 %v21
    %1584 = vmatpush1.msra.mxu0 %v20
    %1585 = vmatprep.subr.mxu0 %v23
    %1586 = vmatpush1.msra.mxu0 %v22
    %1587 = vmatprep.subr.mxu0 %v25
    %1588 = vmatpush1.msra.mxu0 %v24
    %1589 = vmatprep.subr.mxu0 %v27
    %1590 = vmatpush1.msra.mxu0 %v26
    %1591 = vmatprep.subr.mxu0 %v29
    %1592 = vmatpush1.msra.mxu0 %v28
    %1593 = vmatprep.subr.mxu0 %v31
    %1594 = vmatpush1.msra.mxu0 %v30
    %1595 = vmatprep.subr.mxu0 %v33
    %1596 = vmatpush1.msra.mxu0 %v32
    %1597 = vmatprep.subr.mxu0 %v35
    %1598 = vmatpush1.msra.mxu0 %v34
    %1599 = vmatprep.subr.mxu0 %v37
    %1600 = vmatpush1.msra.mxu0 %v36
    %1601 = vmatprep.subr.mxu0 %v39
    %1602 = vmatpush1.msra.mxu0 %v38
    %1603 = vmatprep.subr.mxu0 %v41
    %1604 = vmatpush1.msra.mxu0 %v40
    %1605 = vmatprep.subr.mxu0 %v43
    %1606 = vmatpush1.msra.mxu0 %v42
    %1607 = vmatprep.subr.mxu0 %v45
    %1608 = vmatpush1.msra.mxu0 %v44
    %1609 = vmatprep.subr.mxu0 %v47
    %1610 = vmatpush1.msra.mxu0 %v46
    %1611 = vmatprep.subr.mxu0 %v49
    %1612 = vmatpush1.msra.mxu0 %v48
    %1613 = vmatprep.subr.mxu0 %v51
    %1614 = vmatpush1.msra.mxu0 %v50
    %1615 = vmatprep.subr.mxu0 %v53
    %1616 = vmatpush1.msra.mxu0 %v52
    %1617 = vmatprep.subr.mxu0 %v55
    %1618 = vmatpush1.msra.mxu0 %v54
    %1619 = vmatprep.subr.mxu0 %v57
    %1620 = vmatpush1.msra.mxu0 %v56
    %1621 = vmatprep.subr.mxu0 %v59
    %1622 = vmatpush1.msra.mxu0 %v58
    %1623 = vmatprep.subr.mxu0 %v61
    %1624 = vmatpush1.msra.mxu0 %v60
    %1625 = vmatprep.subr.mxu0 0.0
    %1626 = vmatpush1.msra.mxu0 0.0
    %1627 = vmatprep.subr.mxu0 0.0
    %1628 = vmatpush1.msra.mxu0 0.0
    %1629 = vmatprep.subr.mxu0 0.0
    %1630 = vmatpush1.msra.mxu0 0.0
    %1631 = vmatprep.subr.mxu0 0.0
    %1632 = vmatpush1.msra.mxu0 0.0
    %1633 = vmatprep.subr.mxu0 0.0
    %1634 = vmatpush1.msra.mxu0 0.0
    %1635 = vmatprep.subr.mxu0 0.0
    %1636 = vmatpush1.msra.mxu0 0.0
    %1637 = vmatprep.subr.mxu0 0.0
    %1638 = vmatpush1.msra.mxu0 0.0
    %1639 = vmatprep.subr.mxu0 0.0
    %1640 = vmatpush1.msra.mxu0 0.0
    %1641 = vmatprep.subr.mxu0 0.0
    %1642 = vmatpush1.msra.mxu0 0.0
    %1643 = vmatprep.subr.mxu0 0.0
    %1644 = vmatpush1.msra.mxu0 0.0
    %1645 = vmatprep.subr.mxu0 0.0
    %1646 = vmatpush1.msra.mxu0 0.0
    %1647 = vmatprep.mubr.f32.mxu0 %v1581
    %1648 = vmatmul.mubr.f32.gmra.mrb[0].mxu0 %v1579
    %v1649 = vpop.f32.mrb[0].mxu0
    %v1650 = vadd.f32 0.0, %v1649
    %v1651 = vpop.f32.mrb[0].mxu0
    %v1652 = vadd.f32 0.0, %v1651
    %1653 = vdwg.mxu0
    %v1654 = vmax.f32 %v1650, 0.0
    %v1655 = vmax.f32 %v1652, 0.0
    %s1656 = scalar_lea.vmem %s2, 1920
    %v1657 = vld [vmem:[%s1656] sm:$0xff]
    %v1658 = vld [vmem:[%s1656 + $0x8] sm:$0xff]
    %v1659 = vld [vmem:[%s1656 + $0x10] sm:$0xff]
    %v1660 = vld [vmem:[%s1656 + $0x18] sm:$0xff]
    %v1661 = vld [vmem:[%s1656 + $0x20] sm:$0xff]
    %v1662 = vld [vmem:[%s1656 + $0x28] sm:$0xff]
    %v1663 = vld [vmem:[%s1656 + $0x30] sm:$0xff]
    %v1664 = vld [vmem:[%s1656 + $0x38] sm:$0xff]
    %v1665 = vld [vmem:[%s1656 + $0x40] sm:$0xff]
    %v1666 = vld [vmem:[%s1656 + $0x48] sm:$0xff]
    %v1667 = vld [vmem:[%s1656 + $0x50] sm:$0xff]
    %v1668 = vld [vmem:[%s1656 + $0x58] sm:$0xff]
    %v1669 = vld [vmem:[%s1656 + $0x60] sm:$0xff]
    %v1670 = vld [vmem:[%s1656 + $0x68] sm:$0xff]
    %v1671 = vld [vmem:[%s1656 + $0x70] sm:$0xff]
    %v1672 = vld [vmem:[%s1656 + $0x78] sm:$0xff]
    %v1673 = vld [vmem:[%s1656 + $0x80] sm:$0xff]
    %v1674 = vld [vmem:[%s1656 + $0x88] sm:$0xff]
    %v1675 = vld [vmem:[%s1656 + $0x90] sm:$0xff]
    %v1676 = vld [vmem:[%s1656 + $0x98] sm:$0xff]
    %v1677 = vld [vmem:[%s1656 + $0xa0] sm:$0xff]
    %v1678 = vld [vmem:[%s1656 + $0xa8] sm:$0xff]
    %v1679 = vld [vmem:[%s1656 + $0xb0] sm:$0xff]
    %v1680 = vld [vmem:[%s1656 + $0xb8] sm:$0xff]
    %v1681 = vld [vmem:[%s1656 + $0xc0] sm:$0xff]
    %v1682 = vld [vmem:[%s1656 + $0xc8] sm:$0xff]
    %v1683 = vld [vmem:[%s1656 + $0xd0] sm:$0xff]
    %v1684 = vld [vmem:[%s1656 + $0xd8] sm:$0xff]
    %v1685 = vld [vmem:[%s1656 + $0xe0] sm:$0xff]
    %v1686 = vld [vmem:[%s1656 + $0xe8] sm:$0xff]
    %v1688 = vsel %vm283, %v1655, 0
    %1690 = vmatprep.subr.mxu0 0.0
    %1691 = vmatpush1.msra.mxu0 %v1657
    %1692 = vmatprep.subr.mxu0 0.0
    %1693 = vmatpush1.msra.mxu0 %v1658
    %1694 = vmatprep.subr.mxu0 0.0
    %1695 = vmatpush1.msra.mxu0 %v1659
    %1696 = vmatprep.subr.mxu0 0.0
    %1697 = vmatpush1.msra.mxu0 %v1660
    %1698 = vmatprep.subr.mxu0 0.0
    %1699 = vmatpush1.msra.mxu0 %v1661
    %1700 = vmatprep.subr.mxu0 0.0
    %1701 = vmatpush1.msra.mxu0 %v1662
    %1702 = vmatprep.subr.mxu0 0.0
    %1703 = vmatpush1.msra.mxu0 %v1663
    %1704 = vmatprep.subr.mxu0 0.0
    %1705 = vmatpush1.msra.mxu0 %v1664
    %1706 = vmatprep.subr.mxu0 0.0
    %1707 = vmatpush1.msra.mxu0 %v1665
    %1708 = vmatprep.subr.mxu0 0.0
    %1709 = vmatpush1.msra.mxu0 %v1666
    %1710 = vmatprep.subr.mxu0 0.0
    %1711 = vmatpush1.msra.mxu0 %v1667
    %1712 = vmatprep.subr.mxu0 0.0
    %1713 = vmatpush1.msra.mxu0 %v1668
    %1714 = vmatprep.subr.mxu0 0.0
    %1715 = vmatpush1.msra.mxu0 %v1669
    %1716 = vmatprep.subr.mxu0 0.0
    %1717 = vmatpush1.msra.mxu0 %v1670
    %1718 = vmatprep.subr.mxu0 0.0
    %1719 = vmatpush1.msra.mxu0 %v1671
    %1720 = vmatprep.subr.mxu0 0.0
    %1721 = vmatpush1.msra.mxu0 %v1672
    %1722 = vmatprep.subr.mxu0 0.0
    %1723 = vmatpush1.msra.mxu0 %v1673
    %1724 = vmatprep.subr.mxu0 0.0
    %1725 = vmatpush1.msra.mxu0 %v1674
    %1726 = vmatprep.subr.mxu0 0.0
    %1727 = vmatpush1.msra.mxu0 %v1675
    %1728 = vmatprep.subr.mxu0 0.0
    %1729 = vmatpush1.msra.mxu0 %v1676
    %1730 = vmatprep.subr.mxu0 0.0
    %1731 = vmatpush1.msra.mxu0 %v1677
    %1732 = vmatprep.subr.mxu0 0.0
    %1733 = vmatpush1.msra.mxu0 %v1678
    %1734 = vmatprep.subr.mxu0 0.0
    %1735 = vmatpush1.msra.mxu0 %v1679
    %1736 = vmatprep.subr.mxu0 0.0
    %1737 = vmatpush1.msra.mxu0 %v1680
    %1738 = vmatprep.subr.mxu0 0.0
    %1739 = vmatpush1.msra.mxu0 %v1681
    %1740 = vmatprep.subr.mxu0 0.0
    %1741 = vmatpush1.msra.mxu0 %v1682
    %1742 = vmatprep.subr.mxu0 0.0
    %1743 = vmatpush1.msra.mxu0 %v1683
    %1744 = vmatprep.subr.mxu0 0.0
    %1745 = vmatpush1.msra.mxu0 %v1684
    %1746 = vmatprep.subr.mxu0 0.0
    %1747 = vmatpush1.msra.mxu0 %v1685
    %1748 = vmatprep.subr.mxu0 0.0
    %1749 = vmatpush1.msra.mxu0 %v1686
    %1750 = vmatprep.subr.mxu0 0.0
    %1751 = vmatpush1.msra.mxu0 0.0
    %1752 = vmatprep.subr.mxu0 0.0
    %1753 = vmatpush1.msra.mxu0 0.0
    %1754 = vmatprep.mubr.f32.mxu0 %v1688
    %1755 = vmatmul.mubr.f32.gmra.mrb[0].mxu0 %v1654
    %v1756 = vpop.f32.mrb[0].mxu0
    %v1757 = vadd.f32 0.0, %v1756
    %v1758 = vpop.f32.mrb[0].mxu0
    %1759 = vdwg.mxu0
    %v1760 = vadd.f32 %v1573, %v1757
    %v1761 = vld [vmem:[%s0 + $0x18] sm:$0xff]
    %v1762 = vld [vmem:[%s0 + $0x20] sm:$0xff]
    %v1763 = vld [vmem:[%s0 + $0x28] sm:$0xff]
    %1767 = vrot.lane.b32.xlu0 %v1761, 8
    %v1768 = vpop.permute.xlu0 %1767
    %1769 = vrot.lane.b32.xlu0 %v1762, 8
    %v1770 = vpop.permute.xlu0 %1769
    %1771 = vrot.lane.b32.xlu0 %v1763, 8
    %v1772 = vpop.permute.xlu0 %1771
    %vm1773 = vcmask 64512
    %v1774 = vsel %vm1773, %v1768, %v1770
    %v1775 = vsel %vm1773, %v1770, %v1772
    %v1777 = vsel %vm62, %v1775, 0
    %1779 = vmatprep.subr.mxu0 %v21
    %1780 = vmatpush1.msra.mxu0 %v20
    %1781 = vmatprep.subr.mxu0 %v23
    %1782 = vmatpush1.msra.mxu0 %v22
    %1783 = vmatprep.subr.mxu0 %v25
    %1784 = vmatpush1.msra.mxu0 %v24
    %1785 = vmatprep.subr.mxu0 %v27
    %1786 = vmatpush1.msra.mxu0 %v26
    %1787 = vmatprep.subr.mxu0 %v29
    %1788 = vmatpush1.msra.mxu0 %v28
    %1789 = vmatprep.subr.mxu0 %v31
    %1790 = vmatpush1.msra.mxu0 %v30
    %1791 = vmatprep.subr.mxu0 %v33
    %1792 = vmatpush1.msra.mxu0 %v32
    %1793 = vmatprep.subr.mxu0 %v35
    %1794 = vmatpush1.msra.mxu0 %v34
    %1795 = vmatprep.subr.mxu0 %v37
    %1796 = vmatpush1.msra.mxu0 %v36
    %1797 = vmatprep.subr.mxu0 %v39
    %1798 = vmatpush1.msra.mxu0 %v38
    %1799 = vmatprep.subr.mxu0 %v41
    %1800 = vmatpush1.msra.mxu0 %v40
    %1801 = vmatprep.subr.mxu0 %v43
    %1802 = vmatpush1.msra.mxu0 %v42
    %1803 = vmatprep.subr.mxu0 %v45
    %1804 = vmatpush1.msra.mxu0 %v44
    %1805 = vmatprep.subr.mxu0 %v47
    %1806 = vmatpush1.msra.mxu0 %v46
    %1807 = vmatprep.subr.mxu0 %v49
    %1808 = vmatpush1.msra.mxu0 %v48
    %1809 = vmatprep.subr.mxu0 %v51
    %1810 = vmatpush1.msra.mxu0 %v50
    %1811 = vmatprep.subr.mxu0 %v53
    %1812 = vmatpush1.msra.mxu0 %v52
    %1813 = vmatprep.subr.mxu0 %v55
    %1814 = vmatpush1.msra.mxu0 %v54
    %1815 = vmatprep.subr.mxu0 %v57
    %1816 = vmatpush1.msra.mxu0 %v56
    %1817 = vmatprep.subr.mxu0 %v59
    %1818 = vmatpush1.msra.mxu0 %v58
    %1819 = vmatprep.subr.mxu0 %v61
    %1820 = vmatpush1.msra.mxu0 %v60
    %1821 = vmatprep.subr.mxu0 0.0
    %1822 = vmatpush1.msra.mxu0 0.0
    %1823 = vmatprep.subr.mxu0 0.0
    %1824 = vmatpush1.msra.mxu0 0.0
    %1825 = vmatprep.subr.mxu0 0.0
    %1826 = vmatpush1.msra.mxu0 0.0
    %1827 = vmatprep.subr.mxu0 0.0
    %1828 = vmatpush1.msra.mxu0 0.0
    %1829 = vmatprep.subr.mxu0 0.0
    %1830 = vmatpush1.msra.mxu0 0.0
    %1831 = vmatprep.subr.mxu0 0.0
    %1832 = vmatpush1.msra.mxu0 0.0
    %1833 = vmatprep.subr.mxu0 0.0
    %1834 = vmatpush1.msra.mxu0 0.0
    %1835 = vmatprep.subr.mxu0 0.0
    %1836 = vmatpush1.msra.mxu0 0.0
    %1837 = vmatprep.subr.mxu0 0.0
    %1838 = vmatpush1.msra.mxu0 0.0
    %1839 = vmatprep.subr.mxu0 0.0
    %1840 = vmatpush1.msra.mxu0 0.0
    %1841 = vmatprep.subr.mxu0 0.0
    %1842 = vmatpush1.msra.mxu0 0.0
    %1843 = vmatprep.mubr.f32.mxu0 %v1777
    %1844 = vmatmul.mubr.f32.gmra.mrb[0].mxu0 %v1774
    %v1845 = vpop.f32.mrb[0].mxu0
    %v1846 = vadd.f32 0.0, %v1845
    %v1847 = vpop.f32.mrb[0].mxu0
    %v1848 = vadd.f32 0.0, %v1847
    %1849 = vdwg.mxu0
    %v1850 = vmax.f32 %v1846, 0.0
    %v1851 = vmax.f32 %v1848, 0.0
    %s1852 = scalar_lea.vmem %s2, 2160
    %v1853 = vld [vmem:[%s1852] sm:$0xff]
    %v1854 = vld [vmem:[%s1852 + $0x8] sm:$0xff]
    %v1855 = vld [vmem:[%s1852 + $0x10] sm:$0xff]
    %v1856 = vld [vmem:[%s1852 + $0x18] sm:$0xff]
    %v1857 = vld [vmem:[%s1852 + $0x20] sm:$0xff]
    %v1858 = vld [vmem:[%s1852 + $0x28] sm:$0xff]
    %v1859 = vld [vmem:[%s1852 + $0x30] sm:$0xff]
    %v1860 = vld [vmem:[%s1852 + $0x38] sm:$0xff]
    %v1861 = vld [vmem:[%s1852 + $0x40] sm:$0xff]
    %v1862 = vld [vmem:[%s1852 + $0x48] sm:$0xff]
    %v1863 = vld [vmem:[%s1852 + $0x50] sm:$0xff]
    %v1864 = vld [vmem:[%s1852 + $0x58] sm:$0xff]
    %v1865 = vld [vmem:[%s1852 + $0x60] sm:$0xff]
    %v1866 = vld [vmem:[%s1852 + $0x68] sm:$0xff]
    %v1867 = vld [vmem:[%s1852 + $0x70] sm:$0xff]
    %v1868 = vld [vmem:[%s1852 + $0x78] sm:$0xff]
    %v1869 = vld [vmem:[%s1852 + $0x80] sm:$0xff]
    %v1870 = vld [vmem:[%s1852 + $0x88] sm:$0xff]
    %v1871 = vld [vmem:[%s1852 + $0x90] sm:$0xff]
    %v1872 = vld [vmem:[%s1852 + $0x98] sm:$0xff]
    %v1873 = vld [vmem:[%s1852 + $0xa0] sm:$0xff]
    %v1874 = vld [vmem:[%s1852 + $0xa8] sm:$0xff]
    %v1875 = vld [vmem:[%s1852 + $0xb0] sm:$0xff]
    %v1876 = vld [vmem:[%s1852 + $0xb8] sm:$0xff]
    %v1877 = vld [vmem:[%s1852 + $0xc0] sm:$0xff]
    %v1878 = vld [vmem:[%s1852 + $0xc8] sm:$0xff]
    %v1879 = vld [vmem:[%s1852 + $0xd0] sm:$0xff]
    %v1880 = vld [vmem:[%s1852 + $0xd8] sm:$0xff]
    %v1881 = vld [vmem:[%s1852 + $0xe0] sm:$0xff]
    %v1882 = vld [vmem:[%s1852 + $0xe8] sm:$0xff]
    %v1884 = vsel %vm283, %v1851, 0
    %1886 = vmatprep.subr.mxu0 0.0
    %1887 = vmatpush1.msra.mxu0 %v1853
    %1888 = vmatprep.subr.mxu0 0.0
    %1889 = vmatpush1.msra.mxu0 %v1854
    %1890 = vmatprep.subr.mxu0 0.0
    %1891 = vmatpush1.msra.mxu0 %v1855
    %1892 = vmatprep.subr.mxu0 0.0
    %1893 = vmatpush1.msra.mxu0 %v1856
    %1894 = vmatprep.subr.mxu0 0.0
    %1895 = vmatpush1.msra.mxu0 %v1857
    %1896 = vmatprep.subr.mxu0 0.0
    %1897 = vmatpush1.msra.mxu0 %v1858
    %1898 = vmatprep.subr.mxu0 0.0
    %1899 = vmatpush1.msra.mxu0 %v1859
    %1900 = vmatprep.subr.mxu0 0.0
    %1901 = vmatpush1.msra.mxu0 %v1860
    %1902 = vmatprep.subr.mxu0 0.0
    %1903 = vmatpush1.msra.mxu0 %v1861
    %1904 = vmatprep.subr.mxu0 0.0
    %1905 = vmatpush1.msra.mxu0 %v1862
    %1906 = vmatprep.subr.mxu0 0.0
    %1907 = vmatpush1.msra.mxu0 %v1863
    %1908 = vmatprep.subr.mxu0 0.0
    %1909 = vmatpush1.msra.mxu0 %v1864
    %1910 = vmatprep.subr.mxu0 0.0
    %1911 = vmatpush1.msra.mxu0 %v1865
    %1912 = vmatprep.subr.mxu0 0.0
    %1913 = vmatpush1.msra.mxu0 %v1866
    %1914 = vmatprep.subr.mxu0 0.0
    %1915 = vmatpush1.msra.mxu0 %v1867
    %1916 = vmatprep.subr.mxu0 0.0
    %1917 = vmatpush1.msra.mxu0 %v1868
    %1918 = vmatprep.subr.mxu0 0.0
    %1919 = vmatpush1.msra.mxu0 %v1869
    %1920 = vmatprep.subr.mxu0 0.0
    %1921 = vmatpush1.msra.mxu0 %v1870
    %1922 = vmatprep.subr.mxu0 0.0
    %1923 = vmatpush1.msra.mxu0 %v1871
    %1924 = vmatprep.subr.mxu0 0.0
    %1925 = vmatpush1.msra.mxu0 %v1872
    %1926 = vmatprep.subr.mxu0 0.0
    %1927 = vmatpush1.msra.mxu0 %v1873
    %1928 = vmatprep.subr.mxu0 0.0
    %1929 = vmatpush1.msra.mxu0 %v1874
    %1930 = vmatprep.subr.mxu0 0.0
    %1931 = vmatpush1.msra.mxu0 %v1875
    %1932 = vmatprep.subr.mxu0 0.0
    %1933 = vmatpush1.msra.mxu0 %v1876
    %1934 = vmatprep.subr.mxu0 0.0
    %1935 = vmatpush1.msra.mxu0 %v1877
    %1936 = vmatprep.subr.mxu0 0.0
    %1937 = vmatpush1.msra.mxu0 %v1878
    %1938 = vmatprep.subr.mxu0 0.0
    %1939 = vmatpush1.msra.mxu0 %v1879
    %1940 = vmatprep.subr.mxu0 0.0
    %1941 = vmatpush1.msra.mxu0 %v1880
    %1942 = vmatprep.subr.mxu0 0.0
    %1943 = vmatpush1.msra.mxu0 %v1881
    %1944 = vmatprep.subr.mxu0 0.0
    %1945 = vmatpush1.msra.mxu0 %v1882
    %1946 = vmatprep.subr.mxu0 0.0
    %1947 = vmatpush1.msra.mxu0 0.0
    %1948 = vmatprep.subr.mxu0 0.0
    %1949 = vmatpush1.msra.mxu0 0.0
    %1950 = vmatprep.mubr.f32.mxu0 %v1884
    %1951 = vmatmul.mubr.f32.gmra.mrb[0].mxu0 %v1850
    %v1952 = vpop.f32.mrb[0].mxu0
    %v1953 = vadd.f32 0.0, %v1952
    %v1954 = vpop.f32.mrb[0].mxu0
    %1955 = vdwg.mxu0
    %v1956 = vadd.f32 %v1760, %v1953
    %1957 = vrot.lane.b32.xlu0 %v1762, 80
    %v1958 = vpop.permute.xlu0 %1957
    %1959 = vrot.lane.b32.xlu0 %v1763, 80
    %v1960 = vpop.permute.xlu0 %1959
    %vm1961 = vcmask 654336
    %v1962 = vsel %vm1961, %v1958, %v1960
    %v1964 = vsel %vm62, %v1960, 0
    %1966 = vmatprep.subr.mxu0 %v21
    %1967 = vmatpush1.msra.mxu0 %v20
    %1968 = vmatprep.subr.mxu0 %v23
    %1969 = vmatpush1.msra.mxu0 %v22
    %1970 = vmatprep.subr.mxu0 %v25
    %1971 = vmatpush1.msra.mxu0 %v24
    %1972 = vmatprep.subr.mxu0 %v27
    %1973 = vmatpush1.msra.mxu0 %v26
    %1974 = vmatprep.subr.mxu0 %v29
    %1975 = vmatpush1.msra.mxu0 %v28
    %1976 = vmatprep.subr.mxu0 %v31
    %1977 = vmatpush1.msra.mxu0 %v30
    %1978 = vmatprep.subr.mxu0 %v33
    %1979 = vmatpush1.msra.mxu0 %v32
    %1980 = vmatprep.subr.mxu0 %v35
    %1981 = vmatpush1.msra.mxu0 %v34
    %1982 = vmatprep.subr.mxu0 %v37
    %1983 = vmatpush1.msra.mxu0 %v36
    %1984 = vmatprep.subr.mxu0 %v39
    %1985 = vmatpush1.msra.mxu0 %v38
    %1986 = vmatprep.subr.mxu0 %v41
    %1987 = vmatpush1.msra.mxu0 %v40
    %1988 = vmatprep.subr.mxu0 %v43
    %1989 = vmatpush1.msra.mxu0 %v42
    %1990 = vmatprep.subr.mxu0 %v45
    %1991 = vmatpush1.msra.mxu0 %v44
    %1992 = vmatprep.subr.mxu0 %v47
    %1993 = vmatpush1.msra.mxu0 %v46
    %1994 = vmatprep.subr.mxu0 %v49
    %1995 = vmatpush1.msra.mxu0 %v48
    %1996 = vmatprep.subr.mxu0 %v51
    %1997 = vmatpush1.msra.mxu0 %v50
    %1998 = vmatprep.subr.mxu0 %v53
    %1999 = vmatpush1.msra.mxu0 %v52
    %2000 = vmatprep.subr.mxu0 %v55
    %2001 = vmatpush1.msra.mxu0 %v54
    %2002 = vmatprep.subr.mxu0 %v57
    %2003 = vmatpush1.msra.mxu0 %v56
    %2004 = vmatprep.subr.mxu0 %v59
    %2005 = vmatpush1.msra.mxu0 %v58
    %2006 = vmatprep.subr.mxu0 %v61
    %2007 = vmatpush1.msra.mxu0 %v60
    %2008 = vmatprep.subr.mxu0 0.0
    %2009 = vmatpush1.msra.mxu0 0.0
    %2010 = vmatprep.subr.mxu0 0.0
    %2011 = vmatpush1.msra.mxu0 0.0
    %2012 = vmatprep.subr.mxu0 0.0
    %2013 = vmatpush1.msra.mxu0 0.0
    %2014 = vmatprep.subr.mxu0 0.0
    %2015 = vmatpush1.msra.mxu0 0.0
    %2016 = vmatprep.subr.mxu0 0.0
    %2017 = vmatpush1.msra.mxu0 0.0
    %2018 = vmatprep.subr.mxu0 0.0
    %2019 = vmatpush1.msra.mxu0 0.0
    %2020 = vmatprep.subr.mxu0 0.0
    %2021 = vmatpush1.msra.mxu0 0.0
    %2022 = vmatprep.subr.mxu0 0.0
    %2023 = vmatpush1.msra.mxu0 0.0
    %2024 = vmatprep.subr.mxu0 0.0
    %2025 = vmatpush1.msra.mxu0 0.0
    %2026 = vmatprep.subr.mxu0 0.0
    %2027 = vmatpush1.msra.mxu0 0.0
    %2028 = vmatprep.subr.mxu0 0.0
    %2029 = vmatpush1.msra.mxu0 0.0
    %2030 = vmatprep.mubr.f32.mxu0 %v1964
    %2031 = vmatmul.mubr.f32.gmra.mrb[0].mxu0 %v1962
    %v2032 = vpop.f32.mrb[0].mxu0
    %v2033 = vadd.f32 0.0, %v2032
    %v2034 = vpop.f32.mrb[0].mxu0
    %v2035 = vadd.f32 0.0, %v2034
    %2036 = vdwg.mxu0
    %v2037 = vmax.f32 %v2033, 0.0
    %v2038 = vmax.f32 %v2035, 0.0
    %s2039 = scalar_lea.vmem %s2, 2400
    %v2040 = vld [vmem:[%s2039] sm:$0xff]
    %v2041 = vld [vmem:[%s2039 + $0x8] sm:$0xff]
    %v2042 = vld [vmem:[%s2039 + $0x10] sm:$0xff]
    %v2043 = vld [vmem:[%s2039 + $0x18] sm:$0xff]
    %v2044 = vld [vmem:[%s2039 + $0x20] sm:$0xff]
    %v2045 = vld [vmem:[%s2039 + $0x28] sm:$0xff]
    %v2046 = vld [vmem:[%s2039 + $0x30] sm:$0xff]
    %v2047 = vld [vmem:[%s2039 + $0x38] sm:$0xff]
    %v2048 = vld [vmem:[%s2039 + $0x40] sm:$0xff]
    %v2049 = vld [vmem:[%s2039 + $0x48] sm:$0xff]
    %v2050 = vld [vmem:[%s2039 + $0x50] sm:$0xff]
    %v2051 = vld [vmem:[%s2039 + $0x58] sm:$0xff]
    %v2052 = vld [vmem:[%s2039 + $0x60] sm:$0xff]
    %v2053 = vld [vmem:[%s2039 + $0x68] sm:$0xff]
    %v2054 = vld [vmem:[%s2039 + $0x70] sm:$0xff]
    %v2055 = vld [vmem:[%s2039 + $0x78] sm:$0xff]
    %v2056 = vld [vmem:[%s2039 + $0x80] sm:$0xff]
    %v2057 = vld [vmem:[%s2039 + $0x88] sm:$0xff]
    %v2058 = vld [vmem:[%s2039 + $0x90] sm:$0xff]
    %v2059 = vld [vmem:[%s2039 + $0x98] sm:$0xff]
    %v2060 = vld [vmem:[%s2039 + $0xa0] sm:$0xff]
    %v2061 = vld [vmem:[%s2039 + $0xa8] sm:$0xff]
    %v2062 = vld [vmem:[%s2039 + $0xb0] sm:$0xff]
    %v2063 = vld [vmem:[%s2039 + $0xb8] sm:$0xff]
    %v2064 = vld [vmem:[%s2039 + $0xc0] sm:$0xff]
    %v2065 = vld [vmem:[%s2039 + $0xc8] sm:$0xff]
    %v2066 = vld [vmem:[%s2039 + $0xd0] sm:$0xff]
    %v2067 = vld [vmem:[%s2039 + $0xd8] sm:$0xff]
    %v2068 = vld [vmem:[%s2039 + $0xe0] sm:$0xff]
    %v2069 = vld [vmem:[%s2039 + $0xe8] sm:$0xff]
    %v2071 = vsel %vm283, %v2038, 0
    %2073 = vmatprep.subr.mxu0 0.0
    %2074 = vmatpush1.msra.mxu0 %v2040
    %2075 = vmatprep.subr.mxu0 0.0
    %2076 = vmatpush1.msra.mxu0 %v2041
    %2077 = vmatprep.subr.mxu0 0.0
    %2078 = vmatpush1.msra.mxu0 %v2042
    %2079 = vmatprep.subr.mxu0 0.0
    %2080 = vmatpush1.msra.mxu0 %v2043
    %2081 = vmatprep.subr.mxu0 0.0
    %2082 = vmatpush1.msra.mxu0 %v2044
    %2083 = vmatprep.subr.mxu0 0.0
    %2084 = vmatpush1.msra.mxu0 %v2045
    %2085 = vmatprep.subr.mxu0 0.0
    %2086 = vmatpush1.msra.mxu0 %v2046
    %2087 = vmatprep.subr.mxu0 0.0
    %2088 = vmatpush1.msra.mxu0 %v2047
    %2089 = vmatprep.subr.mxu0 0.0
    %2090 = vmatpush1.msra.mxu0 %v2048
    %2091 = vmatprep.subr.mxu0 0.0
    %2092 = vmatpush1.msra.mxu0 %v2049
    %2093 = vmatprep.subr.mxu0 0.0
    %2094 = vmatpush1.msra.mxu0 %v2050
    %2095 = vmatprep.subr.mxu0 0.0
    %2096 = vmatpush1.msra.mxu0 %v2051
    %2097 = vmatprep.subr.mxu0 0.0
    %2098 = vmatpush1.msra.mxu0 %v2052
    %2099 = vmatprep.subr.mxu0 0.0
    %2100 = vmatpush1.msra.mxu0 %v2053
    %2101 = vmatprep.subr.mxu0 0.0
    %2102 = vmatpush1.msra.mxu0 %v2054
    %2103 = vmatprep.subr.mxu0 0.0
    %2104 = vmatpush1.msra.mxu0 %v2055
    %2105 = vmatprep.subr.mxu0 0.0
    %2106 = vmatpush1.msra.mxu0 %v2056
    %2107 = vmatprep.subr.mxu0 0.0
    %2108 = vmatpush1.msra.mxu0 %v2057
    %2109 = vmatprep.subr.mxu0 0.0
    %2110 = vmatpush1.msra.mxu0 %v2058
    %2111 = vmatprep.subr.mxu0 0.0
    %2112 = vmatpush1.msra.mxu0 %v2059
    %2113 = vmatprep.subr.mxu0 0.0
    %2114 = vmatpush1.msra.mxu0 %v2060
    %2115 = vmatprep.subr.mxu0 0.0
    %2116 = vmatpush1.msra.mxu0 %v2061
    %2117 = vmatprep.subr.mxu0 0.0
    %2118 = vmatpush1.msra.mxu0 %v2062
    %2119 = vmatprep.subr.mxu0 0.0
    %2120 = vmatpush1.msra.mxu0 %v2063
    %2121 = vmatprep.subr.mxu0 0.0
    %2122 = vmatpush1.msra.mxu0 %v2064
    %2123 = vmatprep.subr.mxu0 0.0
    %2124 = vmatpush1.msra.mxu0 %v2065
    %2125 = vmatprep.subr.mxu0 0.0
    %2126 = vmatpush1.msra.mxu0 %v2066
    %2127 = vmatprep.subr.mxu0 0.0
    %2128 = vmatpush1.msra.mxu0 %v2067
    %2129 = vmatprep.subr.mxu0 0.0
    %2130 = vmatpush1.msra.mxu0 %v2068
    %2131 = vmatprep.subr.mxu0 0.0
    %2132 = vmatpush1.msra.mxu0 %v2069
    %2133 = vmatprep.subr.mxu0 0.0
    %2134 = vmatpush1.msra.mxu0 0.0
    %2135 = vmatprep.subr.mxu0 0.0
    %2136 = vmatpush1.msra.mxu0 0.0
    %2137 = vmatprep.mubr.f32.mxu0 %v2071
    %2138 = vmatmul.mubr.f32.gmra.mrb[0].mxu0 %v2037
    %v2139 = vpop.f32.mrb[0].mxu0
    %v2140 = vadd.f32 0.0, %v2139
    %v2141 = vpop.f32.mrb[0].mxu0
    %2142 = vdwg.mxu0
    %v2143 = vadd.f32 %v1956, %v2140
    %v2144 = vld [vmem:[%s0 + $0x20] sm:$0xff]
    %v2145 = vld [vmem:[%s0 + $0x28] sm:$0xff]
    %v2146 = vld [vmem:[%s0 + $0x30] sm:$0xff]
    %2150 = vrot.lane.b32.xlu0 %v2144, 24
    %v2151 = vpop.permute.xlu0 %2150
    %2152 = vrot.lane.b32.xlu0 %v2145, 24
    %v2153 = vpop.permute.xlu0 %2152
    %2154 = vrot.lane.b32.xlu0 %v2146, 24
    %v2155 = vpop.permute.xlu0 %2154
    %vm2156 = vcmask 195584
    %v2157 = vsel %vm2156, %v2151, %v2153
    %v2158 = vsel %vm2156, %v2153, %v2155
    %v2160 = vsel %vm62, %v2158, 0
    %2162 = vmatprep.subr.mxu0 %v21
    %2163 = vmatpush1.msra.mxu0 %v20
    %2164 = vmatprep.subr.mxu0 %v23
    %2165 = vmatpush1.msra.mxu0 %v22
    %2166 = vmatprep.subr.mxu0 %v25
    %2167 = vmatpush1.msra.mxu0 %v24
    %2168 = vmatprep.subr.mxu0 %v27
    %2169 = vmatpush1.msra.mxu0 %v26
    %2170 = vmatprep.subr.mxu0 %v29
    %2171 = vmatpush1.msra.mxu0 %v28
    %2172 = vmatprep.subr.mxu0 %v31
    %2173 = vmatpush1.msra.mxu0 %v30
    %2174 = vmatprep.subr.mxu0 %v33
    %2175 = vmatpush1.msra.mxu0 %v32
    %2176 = vmatprep.subr.mxu0 %v35
    %2177 = vmatpush1.msra.mxu0 %v34
    %2178 = vmatprep.subr.mxu0 %v37
    %2179 = vmatpush1.msra.mxu0 %v36
    %2180 = vmatprep.subr.mxu0 %v39
    %2181 = vmatpush1.msra.mxu0 %v38
    %2182 = vmatprep.subr.mxu0 %v41
    %2183 = vmatpush1.msra.mxu0 %v40
    %2184 = vmatprep.subr.mxu0 %v43
    %2185 = vmatpush1.msra.mxu0 %v42
    %2186 = vmatprep.subr.mxu0 %v45
    %2187 = vmatpush1.msra.mxu0 %v44
    %2188 = vmatprep.subr.mxu0 %v47
    %2189 = vmatpush1.msra.mxu0 %v46
    %2190 = vmatprep.subr.mxu0 %v49
    %2191 = vmatpush1.msra.mxu0 %v48
    %2192 = vmatprep.subr.mxu0 %v51
    %2193 = vmatpush1.msra.mxu0 %v50
    %2194 = vmatprep.subr.mxu0 %v53
    %2195 = vmatpush1.msra.mxu0 %v52
    %2196 = vmatprep.subr.mxu0 %v55
    %2197 = vmatpush1.msra.mxu0 %v54
    %2198 = vmatprep.subr.mxu0 %v57
    %2199 = vmatpush1.msra.mxu0 %v56
    %2200 = vmatprep.subr.mxu0 %v59
    %2201 = vmatpush1.msra.mxu0 %v58
    %2202 = vmatprep.subr.mxu0 %v61
    %2203 = vmatpush1.msra.mxu0 %v60
    %2204 = vmatprep.subr.mxu0 0.0
    %2205 = vmatpush1.msra.mxu0 0.0
    %2206 = vmatprep.subr.mxu0 0.0
    %2207 = vmatpush1.msra.mxu0 0.0
    %2208 = vmatprep.subr.mxu0 0.0
    %2209 = vmatpush1.msra.mxu0 0.0
    %2210 = vmatprep.subr.mxu0 0.0
    %2211 = vmatpush1.msra.mxu0 0.0
    %2212 = vmatprep.subr.mxu0 0.0
    %2213 = vmatpush1.msra.mxu0 0.0
    %2214 = vmatprep.subr.mxu0 0.0
    %2215 = vmatpush1.msra.mxu0 0.0
    %2216 = vmatprep.subr.mxu0 0.0
    %2217 = vmatpush1.msra.mxu0 0.0
    %2218 = vmatprep.subr.mxu0 0.0
    %2219 = vmatpush1.msra.mxu0 0.0
    %2220 = vmatprep.subr.mxu0 0.0
    %2221 = vmatpush1.msra.mxu0 0.0
    %2222 = vmatprep.subr.mxu0 0.0
    %2223 = vmatpush1.msra.mxu0 0.0
    %2224 = vmatprep.subr.mxu0 0.0
    %2225 = vmatpush1.msra.mxu0 0.0
    %2226 = vmatprep.mubr.f32.mxu0 %v2160
    %2227 = vmatmul.mubr.f32.gmra.mrb[0].mxu0 %v2157
    %v2228 = vpop.f32.mrb[0].mxu0
    %v2229 = vadd.f32 0.0, %v2228
    %v2230 = vpop.f32.mrb[0].mxu0
    %v2231 = vadd.f32 0.0, %v2230
    %2232 = vdwg.mxu0
    %v2233 = vmax.f32 %v2229, 0.0
    %v2234 = vmax.f32 %v2231, 0.0
    %s2235 = scalar_lea.vmem %s2, 2640
    %v2236 = vld [vmem:[%s2235] sm:$0xff]
    %v2237 = vld [vmem:[%s2235 + $0x8] sm:$0xff]
    %v2238 = vld [vmem:[%s2235 + $0x10] sm:$0xff]
    %v2239 = vld [vmem:[%s2235 + $0x18] sm:$0xff]
    %v2240 = vld [vmem:[%s2235 + $0x20] sm:$0xff]
    %v2241 = vld [vmem:[%s2235 + $0x28] sm:$0xff]
    %v2242 = vld [vmem:[%s2235 + $0x30] sm:$0xff]
    %v2243 = vld [vmem:[%s2235 + $0x38] sm:$0xff]
    %v2244 = vld [vmem:[%s2235 + $0x40] sm:$0xff]
    %v2245 = vld [vmem:[%s2235 + $0x48] sm:$0xff]
    %v2246 = vld [vmem:[%s2235 + $0x50] sm:$0xff]
    %v2247 = vld [vmem:[%s2235 + $0x58] sm:$0xff]
    %v2248 = vld [vmem:[%s2235 + $0x60] sm:$0xff]
    %v2249 = vld [vmem:[%s2235 + $0x68] sm:$0xff]
    %v2250 = vld [vmem:[%s2235 + $0x70] sm:$0xff]
    %v2251 = vld [vmem:[%s2235 + $0x78] sm:$0xff]
    %v2252 = vld [vmem:[%s2235 + $0x80] sm:$0xff]
    %v2253 = vld [vmem:[%s2235 + $0x88] sm:$0xff]
    %v2254 = vld [vmem:[%s2235 + $0x90] sm:$0xff]
    %v2255 = vld [vmem:[%s2235 + $0x98] sm:$0xff]
    %v2256 = vld [vmem:[%s2235 + $0xa0] sm:$0xff]
    %v2257 = vld [vmem:[%s2235 + $0xa8] sm:$0xff]
    %v2258 = vld [vmem:[%s2235 + $0xb0] sm:$0xff]
    %v2259 = vld [vmem:[%s2235 + $0xb8] sm:$0xff]
    %v2260 = vld [vmem:[%s2235 + $0xc0] sm:$0xff]
    %v2261 = vld [vmem:[%s2235 + $0xc8] sm:$0xff]
    %v2262 = vld [vmem:[%s2235 + $0xd0] sm:$0xff]
    %v2263 = vld [vmem:[%s2235 + $0xd8] sm:$0xff]
    %v2264 = vld [vmem:[%s2235 + $0xe0] sm:$0xff]
    %v2265 = vld [vmem:[%s2235 + $0xe8] sm:$0xff]
    %v2267 = vsel %vm283, %v2234, 0
    %2269 = vmatprep.subr.mxu0 0.0
    %2270 = vmatpush1.msra.mxu0 %v2236
    %2271 = vmatprep.subr.mxu0 0.0
    %2272 = vmatpush1.msra.mxu0 %v2237
    %2273 = vmatprep.subr.mxu0 0.0
    %2274 = vmatpush1.msra.mxu0 %v2238
    %2275 = vmatprep.subr.mxu0 0.0
    %2276 = vmatpush1.msra.mxu0 %v2239
    %2277 = vmatprep.subr.mxu0 0.0
    %2278 = vmatpush1.msra.mxu0 %v2240
    %2279 = vmatprep.subr.mxu0 0.0
    %2280 = vmatpush1.msra.mxu0 %v2241
    %2281 = vmatprep.subr.mxu0 0.0
    %2282 = vmatpush1.msra.mxu0 %v2242
    %2283 = vmatprep.subr.mxu0 0.0
    %2284 = vmatpush1.msra.mxu0 %v2243
    %2285 = vmatprep.subr.mxu0 0.0
    %2286 = vmatpush1.msra.mxu0 %v2244
    %2287 = vmatprep.subr.mxu0 0.0
    %2288 = vmatpush1.msra.mxu0 %v2245
    %2289 = vmatprep.subr.mxu0 0.0
    %2290 = vmatpush1.msra.mxu0 %v2246
    %2291 = vmatprep.subr.mxu0 0.0
    %2292 = vmatpush1.msra.mxu0 %v2247
    %2293 = vmatprep.subr.mxu0 0.0
    %2294 = vmatpush1.msra.mxu0 %v2248
    %2295 = vmatprep.subr.mxu0 0.0
    %2296 = vmatpush1.msra.mxu0 %v2249
    %2297 = vmatprep.subr.mxu0 0.0
    %2298 = vmatpush1.msra.mxu0 %v2250
    %2299 = vmatprep.subr.mxu0 0.0
    %2300 = vmatpush1.msra.mxu0 %v2251
    %2301 = vmatprep.subr.mxu0 0.0
    %2302 = vmatpush1.msra.mxu0 %v2252
    %2303 = vmatprep.subr.mxu0 0.0
    %2304 = vmatpush1.msra.mxu0 %v2253
    %2305 = vmatprep.subr.mxu0 0.0
    %2306 = vmatpush1.msra.mxu0 %v2254
    %2307 = vmatprep.subr.mxu0 0.0
    %2308 = vmatpush1.msra.mxu0 %v2255
    %2309 = vmatprep.subr.mxu0 0.0
    %2310 = vmatpush1.msra.mxu0 %v2256
    %2311 = vmatprep.subr.mxu0 0.0
    %2312 = vmatpush1.msra.mxu0 %v2257
    %2313 = vmatprep.subr.mxu0 0.0
    %2314 = vmatpush1.msra.mxu0 %v2258
    %2315 = vmatprep.subr.mxu0 0.0
    %2316 = vmatpush1.msra.mxu0 %v2259
    %2317 = vmatprep.subr.mxu0 0.0
    %2318 = vmatpush1.msra.mxu0 %v2260
    %2319 = vmatprep.subr.mxu0 0.0
    %2320 = vmatpush1.msra.mxu0 %v2261
    %2321 = vmatprep.subr.mxu0 0.0
    %2322 = vmatpush1.msra.mxu0 %v2262
    %2323 = vmatprep.subr.mxu0 0.0
    %2324 = vmatpush1.msra.mxu0 %v2263
    %2325 = vmatprep.subr.mxu0 0.0
    %2326 = vmatpush1.msra.mxu0 %v2264
    %2327 = vmatprep.subr.mxu0 0.0
    %2328 = vmatpush1.msra.mxu0 %v2265
    %2329 = vmatprep.subr.mxu0 0.0
    %2330 = vmatpush1.msra.mxu0 0.0
    %2331 = vmatprep.subr.mxu0 0.0
    %2332 = vmatpush1.msra.mxu0 0.0
    %2333 = vmatprep.mubr.f32.mxu0 %v2267
    %2334 = vmatmul.mubr.f32.gmra.mrb[0].mxu0 %v2233
    %v2335 = vpop.f32.mrb[0].mxu0
    %v2336 = vadd.f32 0.0, %v2335
    %v2337 = vpop.f32.mrb[0].mxu0
    %2338 = vdwg.mxu0
    %v2339 = vadd.f32 %v2143, %v2336
    %v2340 = vmax.f32 %v2339, 0.0
    %v2341 = vld [vmem:[%s3] sm:$0xff]
    %v2342 = vld [vmem:[%s3 + $0x8] sm:$0xff]
    %v2343 = vld [vmem:[%s3 + $0x10] sm:$0xff]
    %v2344 = vld [vmem:[%s3 + $0x18] sm:$0xff]
    %v2345 = vld [vmem:[%s3 + $0x20] sm:$0xff]
    %v2346 = vld [vmem:[%s3 + $0x28] sm:$0xff]
    %v2347 = vld [vmem:[%s3 + $0x30] sm:$0x3]
    %vm2348 = vcmask 408576
    %v2350 = vsel %vm2348, %v2340, 0
    %vm2352 = vcmask 1041408
    %v2354 = vsel %vm2352, %v2347, 0
    %2356 = vmatprep.subr.mxu0 0.0
    %2357 = vmatpush1.msra.mxu0 %v2341
    %2358 = vmatprep.subr.mxu0 0.0
    %2359 = vmatpush1.msra.mxu0 %v2342
    %2360 = vmatprep.subr.mxu0 0.0
    %2361 = vmatpush1.msra.mxu0 %v2343
    %2362 = vmatprep.subr.mxu0 0.0
    %2363 = vmatpush1.msra.mxu0 %v2344
    %2364 = vmatprep.subr.mxu0 0.0
    %2365 = vmatpush1.msra.mxu0 %v2345
    %2366 = vmatprep.subr.mxu0 0.0
    %2367 = vmatpush1.msra.mxu0 %v2346
    %2368 = vmatprep.subr.mxu0 0.0
    %2369 = vmatpush1.msra.mxu0 %v2354
    %2370 = vmatprep.subr.mxu0 0.0
    %2371 = vmatpush1.msra.mxu0 0.0
    %2372 = vmatprep.subr.mxu0 0.0
    %2373 = vmatpush1.msra.mxu0 0.0
    %2374 = vmatprep.subr.mxu0 0.0
    %2375 = vmatpush1.msra.mxu0 0.0
    %2376 = vmatprep.subr.mxu0 0.0
    %2377 = vmatpush1.msra.mxu0 0.0
    %2378 = vmatprep.subr.mxu0 0.0
    %2379 = vmatpush1.msra.mxu0 0.0
    %2380 = vmatprep.subr.mxu0 0.0
    %2381 = vmatpush1.msra.mxu0 0.0
    %2382 = vmatprep.subr.mxu0 0.0
    %2383 = vmatpush1.msra.mxu0 0.0
    %2384 = vmatprep.subr.mxu0 0.0
    %2385 = vmatpush1.msra.mxu0 0.0
    %2386 = vmatprep.subr.mxu0 0.0
    %2387 = vmatpush1.msra.mxu0 0.0
    %2388 = vmatprep.subr.mxu0 0.0
    %2389 = vmatpush1.msra.mxu0 0.0
    %2390 = vmatprep.subr.mxu0 0.0
    %2391 = vmatpush1.msra.mxu0 0.0
    %2392 = vmatprep.subr.mxu0 0.0
    %2393 = vmatpush1.msra.mxu0 0.0
    %2394 = vmatprep.subr.mxu0 0.0
    %2395 = vmatpush1.msra.mxu0 0.0
    %2396 = vmatprep.subr.mxu0 0.0
    %2397 = vmatpush1.msra.mxu0 0.0
    %2398 = vmatprep.subr.mxu0 0.0
    %2399 = vmatpush1.msra.mxu0 0.0
    %2400 = vmatprep.subr.mxu0 0.0
    %2401 = vmatpush1.msra.mxu0 0.0
    %2402 = vmatprep.subr.mxu0 0.0
    %2403 = vmatpush1.msra.mxu0 0.0
    %2404 = vmatprep.subr.mxu0 0.0
    %2405 = vmatpush1.msra.mxu0 0.0
    %2406 = vmatprep.subr.mxu0 0.0
    %2407 = vmatpush1.msra.mxu0 0.0
    %2408 = vmatprep.subr.mxu0 0.0
    %2409 = vmatpush1.msra.mxu0 0.0
    %2410 = vmatprep.subr.mxu0 0.0
    %2411 = vmatpush1.msra.mxu0 0.0
    %2412 = vmatprep.subr.mxu0 0.0
    %2413 = vmatpush1.msra.mxu0 0.0
    %2414 = vmatprep.subr.mxu0 0.0
    %2415 = vmatpush1.msra.mxu0 0.0
    %2416 = vmatprep.subr.mxu0 0.0
    %2417 = vmatpush1.msra.mxu0 0.0
    %2418 = vmatprep.subr.mxu0 0.0
    %2419 = vmatpush1.msra.mxu0 0.0
    %2420 = vmatprep.mubr.f32.mxu0 0.0
    %2421 = vmatmul.mubr.f32.gmra.mrb[0].mxu0 %v2350
    %v2422 = vpop.f32.mrb[0].mxu0
    %v2423 = vadd.f32 0.0, %v2422
    %v2424 = vpop.f32.mrb[0].mxu0
    %2425 = vdwg.mxu0
    %v2426 = vlaneseq
    %v2427 = vand.u32 %v2426, 127
    %vm2428 = vcmp.lt.s32.totalorder %v2427, 10
    %v2429 = vsel %vm2428, %v2423, -1e+30
    %2430 = vmax.xlane.f32.xlu0 %v2429
    %v2431 = vpop.xlane.xlu0 %2430
    %v2432 = vsub.f32 %v2429, %v2431
    %v2433 = vmul.f32 %v2432, 1.442695
    %v2434 = vpow.pop %v2433
    %2435 = vadd.xlane.f32.xlu0 %v2434
    %v2436 = vpop.xlane.xlu0 %2435
    %v2437 = vlog2.pop %v2436
    %v2438 = vmul.f32 %v2437, 0.6931472
    %v2439 = vadd.f32 %v2431, %v2438
    %v2440 = vsub.f32 %v2429, %v2439
    %2441 = vst [vmem:[#allocation2] sm:$0xff] %v2440
    // Predicated region
    $region18: #{tpu_custom_call.1} parent=1 // pred_check
      _
    $region19: #{tpu_custom_call.1} parent=1 // pred_check_branch
      %2443 = sbr.rel (0) target = $region21
    $region20: #{tpu_custom_call.1} parent=1 // pred_region
      %s2445 = ssub.s32 128, 128
      %2446 = vsyncadd [#allocation3], %s2445
      %s2448 = sshll.u32 [#allocation2], 4
      %s2449 = int_to_ptr.vmem [resolvable:$true] %s2448
      %2451 = dma.vmem_to_hbm [thread:$0]  %s2449, 128, %s4, [#allocation3]
    $region21: #{tpu_custom_call.1} parent=1 // pred_fallthru
      _
    // Predicated region
    $region22: #{tpu_custom_call.1} parent=1 // pred_check
      _
    $region23: #{tpu_custom_call.1} parent=1 // pred_check_branch
      %2453 = sbr.rel (0) target = $region25
    $region24: #{tpu_custom_call.1} parent=1 // pred_region
      %2454 = dma.done [#allocation3], 128
    $region25: #{tpu_custom_call.1} parent=1 // pred_fallthru
      _
    %2455 = vsyncpa [#allocation3], 1

</llo_original>
